<compile_context>
chip_gen: v7x
topology: tpu7x:2x2x1
jax: 0.10.0
libtpu: 0.0.40
codegen_flags: <defaults>
</compile_context>

<pallas_src>
import functools

import jax
import jax.numpy as jnp
from jax.experimental import pallas as pl
from jax.experimental.pallas import tpu as pltpu

NEG_SLOPE = 0.05          # LeakyReLU slope used by CCALayer
BN_EPS = 1e-5             # nn.BatchNorm2d default eps


# --------------------------------------------------------------------------
# Fused CCA kernel: one-pass stats -> conv_du (2 matmuls + lrelu + sigmoid)
# -> x * y.  One grid step per Bt-sized batch tile; everything stays in VMEM.
# --------------------------------------------------------------------------
def _cca_fused_kernel(x_ref, w1_ref, b1_ref, w2_ref, b2_ref, o_ref, *, hw):
    x = x_ref[...].astype(jnp.float32)                      # (Bt, HW, C) f32
    inv_n = 1.0 / hw

    # stdv_channels(x) + avg_pool(x): single-pass sum / sum-of-squares.
    s1 = jnp.sum(x, axis=1)                                 # (Bt, C)
    s2 = jnp.sum(x * x, axis=1)                             # (Bt, C)
    mean = s1 * inv_n
    var = jnp.maximum(s2 * inv_n - mean * mean, 0.0)        # clamp cancellation
    y = jnp.sqrt(var) + mean                                # (Bt, C)

    # conv_du[0]: 1x1 conv (C -> cr), w1 stored lane-dense as (cr, C);
    # contract on the C axis.  Then LeakyReLU(0.05).
    y = jax.lax.dot_general(y, w1_ref[...], (((1,), (1,)), ((), ())),
                            preferred_element_type=jnp.float32) + b1_ref[...]
    y = jnp.where(y >= 0.0, y, NEG_SLOPE * y)

    # conv_du[2..4]: 1x1 conv (cr -> C) + folded eval-mode BN + sigmoid (EUP).
    y = jnp.dot(y, w2_ref[...], preferred_element_type=jnp.float32) + b2_ref[...]
    y = jax.nn.sigmoid(y)                                   # (Bt, C)

    # Channel attention: broadcast (Bt, 1, C) over the lane-dense output block.
    o_ref[...] = (x * y[:, None, :]).astype(o_ref.dtype)


def _pick_batch_tile(B, HW, C, itemsize, vmem_budget_bytes):
    """Largest Bt (<=8, divisor of B) whose double-buffered in+out blocks fit
    the per-step VMEM budget, while keeping >=2 grid steps when B >= 2 so both
    v7x TensorCores stay busy."""
    per_img = 2 * 2 * HW * C * itemsize          # (in + out), double-buffered
    bt = int(max(min(8, B, vmem_budget_bytes // per_img), 1))
    while B % bt:
        bt -= 1
    if B >= 2 and B // bt < 2:
        bt2 = bt - 1
        while bt2 >= 1 and (B % bt2 or B // bt2 < 2):
            bt2 -= 1
        if bt2 >= 1:
            bt = bt2
    return bt


def cca_layer(x, params, *, vmem_budget_bytes=16 * 1024 * 1024):
    """x: (B, H, W, C) float32/bfloat16, NHWC. Returns same shape/dtype."""
    B, H, W, C = x.shape
    HW = H * W
    cr = params["w1"].shape[0]
    itemsize = jnp.dtype(x.dtype).itemsize

    bt = _pick_batch_tile(B, HW, C, itemsize, vmem_budget_bytes)
    # TODO(synk): if even Bt=1 exceeds the VMEM budget (very large H*W), add a
    # spatially tiled two-sweep variant (grid=(B_tiles, HW_tiles) with
    # sum/sum_sq scratch accumulators) instead of one resident (HW, C) block.

    x3 = x.reshape(B, HW, C)                     # free view: NHWC is contiguous

    # Explicit VMEM budgeting (v5e scoped default 16 MiB, v6e/v7x 32 MiB;
    # v7x physical VMEM is only 64 MiB).
    per_step_bytes = 2 * 2 * bt * HW * C * itemsize
    vmem_limit = int(min(max(2 * per_step_bytes + (2 << 20), 32 << 20), 100 << 20))

    flops = 5 * B * HW * C + 4 * B * C * cr
    bytes_accessed = 2 * B * HW * C * itemsize + (2 * C * cr + C + cr) * 4

    out = pl.pallas_call(
        functools.partial(_cca_fused_kernel, hw=HW),
        out_shape=jax.ShapeDtypeStruct((B, HW, C), x.dtype),
        grid=(B // bt,),
        in_specs=[
            pl.BlockSpec((bt, HW, C), lambda b: (b, 0, 0)),  # x (Bt images/step)
            pl.BlockSpec((cr, C), lambda b: (0, 0)),         # conv_du[0] weight (lane-dense)
            pl.BlockSpec((1, cr), lambda b: (0, 0)),         # conv_du[0] bias
            pl.BlockSpec((cr, C), lambda b: (0, 0)),         # conv_du[2] weight (BN folded)
            pl.BlockSpec((1, C), lambda b: (0, 0)),          # conv_du[2] bias   (BN folded)
        ],
        out_specs=pl.BlockSpec((bt, HW, C), lambda b: (b, 0, 0)),
        compiler_params=pltpu.CompilerParams(
            # batch tiles are independent -> spread over both TCs on v7x
            dimension_semantics=("parallel",),
            vmem_limit_bytes=vmem_limit),
        cost_estimate=pl.CostEstimate(
            flops=int(flops),
            transcendentals=int(2 * B * C),
            bytes_accessed=int(bytes_accessed)),
    )(x3, params["w1"], params["b1"], params["w2"], params["b2"])
    return out.reshape(B, H, W, C)


# --------------------------------------------------------------------------
# Parameter construction (BN eval-mode folding happens here).
# --------------------------------------------------------------------------
def init_params(key, C, reduction=16):
    cr = max(C // reduction, 1)
    bn_scale = 1.0 / jnp.sqrt(1.0 + BN_EPS)   # eval-mode BN with default stats
    k1, k2, k3, k4 = jax.random.split(key, 4)
    w1 = (1.0 / jnp.sqrt(C)) * jax.random.normal(k1, (cr, C), jnp.float32)   # (cr, C)
    b1 = 0.01 * jax.random.normal(k2, (1, cr), jnp.float32)
    w2 = (1.0 / jnp.sqrt(cr)) * jax.random.normal(k3, (cr, C), jnp.float32) * bn_scale
    b2 = 0.01 * jax.random.normal(k4, (1, C), jnp.float32) * bn_scale
    return {"w1": w1, "b1": b1, "w2": w2, "b2": b2}


# --------------------------------------------------------------------------
# Pure-JAX reference (same math) for a correctness check.
# --------------------------------------------------------------------------
def cca_reference(x, params):
    x = x.astype(jnp.float32)
    B, H, W, C = x.shape
    mean = jnp.mean(x, axis=(1, 2), keepdims=True)                    # (B,1,1,C)
    var = jnp.mean((x - mean) ** 2, axis=(1, 2), keepdims=True)
    y = (jnp.sqrt(var) + mean).reshape(B, C)
    y = y @ params["w1"].T + params["b1"]
    y = jnp.where(y >= 0.0, y, NEG_SLOPE * y)
    y = y @ params["w2"] + params["b2"]
    y = jax.nn.sigmoid(y).reshape(B, 1, 1, C)
    return x * y


if __name__ == "__main__":
    key = jax.random.PRNGKey(0)
    kx, kp = jax.random.split(key)

    # NHWC; corresponds to a PyTorch NCHW input of shape (8, 128, 16, 16).
    # C=128 keeps the output block exactly one full lane width (dense stores);
    # reduction=16 (module default) -> C//reduction = 8.  B=8 exercises the
    # batched grid step (Bt=4 per step, grid=(2,)).
    B, H, W, C = 8, 16, 16, 128
    x = jax.random.normal(kx, (B, H, W, C), jnp.float32)
    params = init_params(kp, C, reduction=16)

    fwd = jax.jit(lambda xx: cca_layer(xx, params))
    out = fwd(x)
    jax.block_until_ready(out)

    ref = cca_reference(x, params)
    assert out.shape == (B, H, W, C)
    assert bool(jnp.all(jnp.isfinite(out)))
    assert bool(jnp.allclose(out, ref, rtol=1e-4, atol=1e-4)), (
        float(jnp.max(jnp.abs(out - ref))))

    # bf16 I/O path (stats / matmuls still run in f32 inside the kernel).
    xb = x.astype(jnp.bfloat16)
    outb = jax.jit(lambda xx: cca_layer(xx, params))(xb)
    jax.block_until_ready(outb)
    refb = cca_reference(xb, params)
    assert outb.dtype == jnp.bfloat16
    assert bool(jnp.allclose(outb.astype(jnp.float32), refb, rtol=5e-2, atol=5e-2))

    print("KERNEL_OK")
</pallas_src>

<mosaic_0001>
module attributes {stable_mosaic.version = 11 : i64} {
  func.func @_cca_fused_kernel(%arg0: i32, %arg1: memref<4x256x128xf32, #tpu.memory_space<vmem>>, %arg2: memref<8x128xf32, #tpu.memory_space<vmem>>, %arg3: memref<1x8xf32, #tpu.memory_space<vmem>>, %arg4: memref<8x128xf32, #tpu.memory_space<vmem>>, %arg5: memref<1x128xf32, #tpu.memory_space<vmem>>, %arg6: memref<4x256x128xf32, #tpu.memory_space<vmem>>) attributes {dimension_semantics = [#tpu.dimension_semantics<parallel>], iteration_bounds = array<i64: 2>, scalar_prefetch = 0 : i64, scratch_operands = 0 : i64, tpu.core_type = #tpu.core_type<tc>, window_params = [{transform_indices = @transform_0, window_bounds = array<i64: 4, 256, 128>}, {pipeline_mode = #tpu.pipeline_mode<synchronous>, transform_indices = @transform_1, window_bounds = array<i64: 8, 128>}, {pipeline_mode = #tpu.pipeline_mode<synchronous>, transform_indices = @transform_2, window_bounds = array<i64: 1, 8>}, {pipeline_mode = #tpu.pipeline_mode<synchronous>, transform_indices = @transform_3, window_bounds = array<i64: 8, 128>}, {pipeline_mode = #tpu.pipeline_mode<synchronous>, transform_indices = @transform_4, window_bounds = array<i64: 1, 128>}, {transform_indices = @transform_5, window_bounds = array<i64: 4, 256, 128>}]} {
    %c0 = arith.constant 0 : index
    %c0_0 = arith.constant 0 : index
    %c0_1 = arith.constant 0 : index
    %0 = vector.load %arg1[%c0, %c0_0, %c0_1] : memref<4x256x128xf32, #tpu.memory_space<vmem>>, vector<4x256x128xf32>
    %cst = arith.constant dense<0.000000e+00> : vector<4x128xf32>
    %1 = vector.multi_reduction <add>, %0, %cst [1] : vector<4x256x128xf32> to vector<4x128xf32>
    %2 = arith.mulf %0, %0 : vector<4x256x128xf32>
    %cst_2 = arith.constant dense<0.000000e+00> : vector<4x128xf32>
    %3 = vector.multi_reduction <add>, %2, %cst_2 [1] : vector<4x256x128xf32> to vector<4x128xf32>
    %cst_3 = arith.constant 3.906250e-03 : f32
    %4 = vector.broadcast %cst_3 : f32 to vector<4x128xf32>
    %5 = arith.mulf %1, %4 : vector<4x128xf32>
    %cst_4 = arith.constant 3.906250e-03 : f32
    %6 = vector.broadcast %cst_4 : f32 to vector<4x128xf32>
    %7 = arith.mulf %3, %6 : vector<4x128xf32>
    %8 = arith.mulf %5, %5 : vector<4x128xf32>
    %9 = arith.subf %7, %8 : vector<4x128xf32>
    %cst_5 = arith.constant 0.000000e+00 : f32
    %10 = vector.broadcast %cst_5 : f32 to vector<4x128xf32>
    %11 = arith.maximumf %9, %10 : vector<4x128xf32>
    %12 = math.sqrt %11 : vector<4x128xf32>
    %13 = arith.addf %12, %5 : vector<4x128xf32>
    %c0_6 = arith.constant 0 : index
    %c0_7 = arith.constant 0 : index
    %14 = vector.load %arg2[%c0_6, %c0_7] : memref<8x128xf32, #tpu.memory_space<vmem>>, vector<8x128xf32>
    %cst_8 = arith.constant dense<0.000000e+00> : vector<4x8xf32>
    %15 = tpu.matmul %13, %14, %cst_8 {dimension_numbers = #tpu.dot_dimension_numbers<[1], [1], [0], [0], [0, 0, 1, 0], [], []>} : vector<4x128xf32>, vector<8x128xf32>, vector<4x8xf32> -> vector<4x8xf32>
    %c0_9 = arith.constant 0 : index
    %c0_10 = arith.constant 0 : index
    %16 = vector.load %arg3[%c0_9, %c0_10] : memref<1x8xf32, #tpu.memory_space<vmem>>, vector<1x8xf32>
    %17 = vector.broadcast %16 : vector<1x8xf32> to vector<4x8xf32>
    %18 = arith.addf %15, %17 : vector<4x8xf32>
    %cst_11 = arith.constant 0.000000e+00 : f32
    %19 = vector.broadcast %cst_11 : f32 to vector<4x8xf32>
    %20 = arith.cmpf oge, %18, %19 : vector<4x8xf32>
    %cst_12 = arith.constant 5.000000e-02 : f32
    %21 = vector.broadcast %cst_12 : f32 to vector<4x8xf32>
    %22 = arith.mulf %21, %18 : vector<4x8xf32>
    %23 = arith.select %20, %18, %22 : vector<4x8xi1>, vector<4x8xf32>
    %c0_13 = arith.constant 0 : index
    %c0_14 = arith.constant 0 : index
    %24 = vector.load %arg4[%c0_13, %c0_14] : memref<8x128xf32, #tpu.memory_space<vmem>>, vector<8x128xf32>
    %cst_15 = arith.constant dense<0.000000e+00> : vector<4x128xf32>
    %25 = tpu.matmul %23, %24, %cst_15 {dimension_numbers = #tpu.dot_dimension_numbers<[1], [0], [0], [1], [0, 0, 1, 1], [], []>} : vector<4x8xf32>, vector<8x128xf32>, vector<4x128xf32> -> vector<4x128xf32>
    %c0_16 = arith.constant 0 : index
    %c0_17 = arith.constant 0 : index
    %26 = vector.load %arg5[%c0_16, %c0_17] : memref<1x128xf32, #tpu.memory_space<vmem>>, vector<1x128xf32>
    %27 = vector.broadcast %26 : vector<1x128xf32> to vector<4x128xf32>
    %28 = arith.addf %25, %27 : vector<4x128xf32>
    %29 = arith.negf %28 : vector<4x128xf32>
    %30 = math.exp %29 : vector<4x128xf32>
    %cst_18 = arith.constant 1.000000e+00 : f32
    %31 = vector.broadcast %cst_18 : f32 to vector<4x128xf32>
    %32 = arith.addf %31, %30 : vector<4x128xf32>
    %33 = arith.divf %31, %32 : vector<4x128xf32>
    %34 = vector.shape_cast %33 : vector<4x128xf32> to vector<4x1x128xf32>
    %35 = vector.broadcast %34 : vector<4x1x128xf32> to vector<4x256x128xf32>
    %36 = arith.mulf %0, %35 : vector<4x256x128xf32>
    %c0_19 = arith.constant 0 : index
    %c0_20 = arith.constant 0 : index
    %c0_21 = arith.constant 0 : index
    %37 = vector.load %arg6[%c0_19, %c0_20, %c0_21] : memref<4x256x128xf32, #tpu.memory_space<vmem>>, vector<4x256x128xf32>
    tpu.vector_store %arg6[%c0_19, %c0_20, %c0_21], %36 {strides = array<i32>} : memref<4x256x128xf32, #tpu.memory_space<vmem>>, vector<4x256x128xf32>,
    return
  }
  func.func @transform_0(%arg0: i32) -> (i32, i32, i32) {
    %c0_i32 = arith.constant 0 : i32
    %c0_i32_0 = arith.constant 0 : i32
    %c0_i32_1 = arith.constant 0 : i32
    return %arg0, %c0_i32, %c0_i32_0 : i32, i32, i32
  }
  func.func @transform_1(%arg0: i32) -> (i32, i32) {
    %c0_i32 = arith.constant 0 : i32
    %c0_i32_0 = arith.constant 0 : i32
    %c0_i32_1 = arith.constant 0 : i32
    return %c0_i32, %c0_i32_0 : i32, i32
  }
  func.func @transform_2(%arg0: i32) -> (i32, i32) {
    %c0_i32 = arith.constant 0 : i32
    %c0_i32_0 = arith.constant 0 : i32
    %c0_i32_1 = arith.constant 0 : i32
    return %c0_i32, %c0_i32_0 : i32, i32
  }
  func.func @transform_3(%arg0: i32) -> (i32, i32) {
    %c0_i32 = arith.constant 0 : i32
    %c0_i32_0 = arith.constant 0 : i32
    %c0_i32_1 = arith.constant 0 : i32
    return %c0_i32, %c0_i32_0 : i32, i32
  }
  func.func @transform_4(%arg0: i32) -> (i32, i32) {
    %c0_i32 = arith.constant 0 : i32
    %c0_i32_0 = arith.constant 0 : i32
    %c0_i32_1 = arith.constant 0 : i32
    return %c0_i32, %c0_i32_0 : i32, i32
  }
  func.func @transform_5(%arg0: i32) -> (i32, i32, i32) {
    %c0_i32 = arith.constant 0 : i32
    %c0_i32_0 = arith.constant 0 : i32
    %c0_i32_1 = arith.constant 0 : i32
    return %arg0, %c0_i32, %c0_i32_0 : i32, i32, i32
  }
}

</mosaic_0001>

<llo_original>
// kernel: _lambda_.1
$region0: #{_lambda_.1}
  #allocation0 [shape = 'u32[]', space=smem, size = 0x4, offset = 0x4, fixed_abs, tag = 'smem constant byte address 0x4 - core index']
  #allocation1 [shape = 'u32[144,128]{1,0:T(1,128)}', space=vmem, size = 0x12000, scoped, tag = 'internal scratch']
  %s0 = inlined_call_operand.hbm [shape: f32[8,256,128], index: 0, kind: input, shape index: {}]
  %s1 = inlined_call_operand.hbm [shape: f32[8,128], index: 1, kind: input, shape index: {}]
  %s2 = inlined_call_operand.vmem [shape: f32[1,8], index: 2, kind: input, shape index: {}]
  %s3 = inlined_call_operand.vmem [shape: f32[8,128], index: 3, kind: input, shape index: {}]
  %s4 = inlined_call_operand.vmem [shape: f32[1,128], index: 4, kind: input, shape index: {}]
  %s5 = inlined_call_operand.hbm [shape: f32[8,256,128], index: 5, kind: output, shape index: {}]
  %s6 = sld [smem:[#allocation0]]
  $region61: #{_lambda_.1} parent=0
    _
  %s8 = ssub.s32 1, %s6
  %s9 = scalar_select 0, %s8, %s6
  $region1: #{_lambda_.1} parent=0
    #allocation2 [shape = 'u8[1048576]{0}', space=vmem, size = 0x100000, scoped, tag = 'input window, operand 0']
    #allocation3 [shape = 's32[2]{0}', space=sflag, size = 0x8, scoped, tag = 'scoped memory for _lambda_.1']
    #allocation4 [shape = 's32[2]{0}', space=sflag, size = 0x8, scoped, tag = 'scoped memory for _lambda_.1']
    #allocation5 [shape = 'u8[4096]{0}', space=vmem, size = 0x1000, scoped, tag = 'input window, operand 1, single buffered']
    #allocation6 [shape = 's32[1]{0}', space=sflag, size = 0x4, scoped, tag = 'scoped memory for _lambda_.1']
    #allocation7 [shape = 'u8[1048576]{0}', space=vmem, size = 0x100000, scoped, tag = 'output window, operand 0']
    %10 = vsyncpa [#allocation3], 0
    %s11 = scalar_lea.sflag [#allocation3], 1
    %12 = vsyncpa %s11, 0
    %13 = vsyncpa [#allocation6], 0
    %14 = vsyncpa [#allocation4], 0
    %s15 = scalar_lea.sflag [#allocation4], 1
    %16 = vsyncpa %s15, 0
    loop: start=0, step=1, limit=4
    $region2: #{_lambda_.1} parent=1 // loop_pre_header
      _
    $region3: #{_lambda_.1} parent=1 // loop_header
      %s18 = sphi 0, %s22
      %p19 = scmp.ge.s32.totalorder %s18, 4
      %s28 = sphi 0, %s30
      %s31 = sphi 0, %s28
      %s32 = sphi 0, %s31
      %s48 = sphi 0, %s32
      %s52 = sphi 0, %s52
      %s54 = sphi 0, %s52
      %s55 = sphi 0, %s54
      %s69 = sphi 0, %s55
      %s73 = sphi 0, %s73
      %s75 = sphi 0, %s73
      %s76 = sphi 0, %s75
      %s90 = sphi 0, %s76
      %s94 = sphi 0, %s94
      %s96 = sphi 0, %s94
      %s97 = sphi 0, %s96
      %s111 = sphi 0, %s97
      %s115 = sphi 0, %s115
      %s117 = sphi 0, %s115
      %s118 = sphi 0, %s117
      %s132 = sphi 0, %s118
      %s138 = sphi 0, %s140
      %s141 = sphi 0, %s138
      %s142 = sphi 0, %s141
      %s158 = sphi 0, %s142
    $region4: #{_lambda_.1} parent=1 // loop_header_branch
      %21 = sbr.rel (%p19) target = $region8
    $region5: #{_lambda_.1} parent=1 // loop_body
      %s23 = ssub.s32 %s18, 1
      %s24 = ssub.s32 %s18, 2
      %s25 = sadd.s32 %s18, 1
      %s26 = ssub.s32 %s18, %s25
      %p27 = scmp.eq.s32.totalorder %s26, 0
      %s29 = sadd.s32 %s28, 1
      %s30 = scalar_select %p27, %s28, %s29
      %p33 = pneg %p27
      %p34 = scmp.eq.s32.totalorder %s18, 1
      %p35 = por %p33, %p34
      %p36 = scmp.ne.s32.totalorder %s28, %s31
      %p37 = scmp.eq.s32.totalorder %s18, 0
      %p38 = por %p36, %p37
      %p39 = scmp.ne.s32.totalorder %s28, %s31
      %p40 = scmp.eq.s32.totalorder %s23, 1
      %p41 = por %p39, %p40
      %p42 = scmp.ne.s32.totalorder %s31, %s32
      %p43 = scmp.eq.s32.totalorder %s23, 0
      %p44 = por %p42, %p43
      %p45 = scmp.ne.s32.totalorder %s31, %s32
      %p46 = scmp.eq.s32.totalorder %s24, 1
      %p47 = por %p45, %p46
      %p49 = scmp.ne.s32.totalorder %s32, %s48
      %p50 = scmp.eq.s32.totalorder %s24, 0
      %p51 = por %p49, %p50
      %s53 = sadd.s32 %s52, 1
      %p56 = scmp.eq.s32.totalorder %s18, 1
      %p57 = scmp.ne.s32.totalorder %s52, %s54
      %p58 = scmp.eq.s32.totalorder %s18, 0
      %p59 = por %p57, %p58
      %p60 = scmp.ne.s32.totalorder %s52, %s54
      %p61 = scmp.eq.s32.totalorder %s23, 1
      %p62 = por %p60, %p61
      %p63 = scmp.ne.s32.totalorder %s54, %s55
      %p64 = scmp.eq.s32.totalorder %s23, 0
      %p65 = por %p63, %p64
      %p66 = scmp.ne.s32.totalorder %s54, %s55
      %p67 = scmp.eq.s32.totalorder %s24, 1
      %p68 = por %p66, %p67
      %p70 = scmp.ne.s32.totalorder %s55, %s69
      %p71 = scmp.eq.s32.totalorder %s24, 0
      %p72 = por %p70, %p71
      %s74 = sadd.s32 %s73, 1
      %p77 = scmp.eq.s32.totalorder %s18, 1
      %p78 = scmp.ne.s32.totalorder %s73, %s75
      %p79 = scmp.eq.s32.totalorder %s18, 0
      %p80 = por %p78, %p79
      %p81 = scmp.ne.s32.totalorder %s73, %s75
      %p82 = scmp.eq.s32.totalorder %s23, 1
      %p83 = por %p81, %p82
      %p84 = scmp.ne.s32.totalorder %s75, %s76
      %p85 = scmp.eq.s32.totalorder %s23, 0
      %p86 = por %p84, %p85
      %p87 = scmp.ne.s32.totalorder %s75, %s76
      %p88 = scmp.eq.s32.totalorder %s24, 1
      %p89 = por %p87, %p88
      %p91 = scmp.ne.s32.totalorder %s76, %s90
      %p92 = scmp.eq.s32.totalorder %s24, 0
      %p93 = por %p91, %p92
      %s95 = sadd.s32 %s94, 1
      %p98 = scmp.eq.s32.totalorder %s18, 1
      %p99 = scmp.ne.s32.totalorder %s94, %s96
      %p100 = scmp.eq.s32.totalorder %s18, 0
      %p101 = por %p99, %p100
      %p102 = scmp.ne.s32.totalorder %s94, %s96
      %p103 = scmp.eq.s32.totalorder %s23, 1
      %p104 = por %p102, %p103
      %p105 = scmp.ne.s32.totalorder %s96, %s97
      %p106 = scmp.eq.s32.totalorder %s23, 0
      %p107 = por %p105, %p106
      %p108 = scmp.ne.s32.totalorder %s96, %s97
      %p109 = scmp.eq.s32.totalorder %s24, 1
      %p110 = por %p108, %p109
      %p112 = scmp.ne.s32.totalorder %s97, %s111
      %p113 = scmp.eq.s32.totalorder %s24, 0
      %p114 = por %p112, %p113
      %s116 = sadd.s32 %s115, 1
      %p119 = scmp.eq.s32.totalorder %s18, 1
      %p120 = scmp.ne.s32.totalorder %s115, %s117
      %p121 = scmp.eq.s32.totalorder %s18, 0
      %p122 = por %p120, %p121
      %p123 = scmp.ne.s32.totalorder %s115, %s117
      %p124 = scmp.eq.s32.totalorder %s23, 1
      %p125 = por %p123, %p124
      %p126 = scmp.ne.s32.totalorder %s117, %s118
      %p127 = scmp.eq.s32.totalorder %s23, 0
      %p128 = por %p126, %p127
      %p129 = scmp.ne.s32.totalorder %s117, %s118
      %p130 = scmp.eq.s32.totalorder %s24, 1
      %p131 = por %p129, %p130
      %p133 = scmp.ne.s32.totalorder %s118, %s132
      %p134 = scmp.eq.s32.totalorder %s24, 0
      %p135 = por %p133, %p134
      %s136 = ssub.s32 %s18, %s25
      %p137 = scmp.eq.s32.totalorder %s136, 0
      %s139 = sadd.s32 %s138, 1
      %s140 = scalar_select %p137, %s138, %s139
      %p143 = pneg %p137
      %p144 = scmp.eq.s32.totalorder %s18, 1
      %p145 = por %p143, %p144
      %p146 = scmp.ne.s32.totalorder %s138, %s141
      %p147 = scmp.eq.s32.totalorder %s18, 0
      %p148 = por %p146, %p147
      %p149 = scmp.ne.s32.totalorder %s138, %s141
      %p150 = scmp.eq.s32.totalorder %s23, 1
      %p151 = por %p149, %p150
      %p152 = scmp.ne.s32.totalorder %s141, %s142
      %p153 = scmp.eq.s32.totalorder %s23, 0
      %p154 = por %p152, %p153
      %p155 = scmp.ne.s32.totalorder %s141, %s142
      %p156 = scmp.eq.s32.totalorder %s24, 1
      %p157 = por %p155, %p156
      %p159 = scmp.ne.s32.totalorder %s142, %s158
      %p160 = scmp.eq.s32.totalorder %s24, 0
      %p161 = por %p159, %p160
      %p162 = scmp.le.s32.totalorder 1, %s18
      %p163 = scmp.lt.s32.totalorder %s18, 3
      %p164 = pnand %p162, %p163
      %p165 = pneg %p164
      // Predicated region
      $region9: #{_lambda_.1} parent=5 // pred_check
        _
      $region10: #{_lambda_.1} parent=5 // pred_check_branch
        %167 = sbr.rel (%p164) target = $region12
      $region11: #{_lambda_.1} parent=5 // pred_region
        %s168 = ssub.s32 %s18, 1
        // Predicated region
        $region13: #{_lambda_.1} parent=11 // pred_check
          %p169 = pneg %p65
        $region14: #{_lambda_.1} parent=11 // pred_check_branch
          %171 = sbr.rel (%p169) target = $region16
        $region15: #{_lambda_.1} parent=11 // pred_region
          %s173 = ssub.s32 128, 128
          %174 = vsyncadd [#allocation6], %s173
          %s176 = sshll.u32 [#allocation5], 4
          %s177 = int_to_ptr.vmem [resolvable:$true] %s176
          %179 = dma.hbm_to_vmem [thread:$0]  %s1, 128, %s177, [#allocation6]
        $region16: #{_lambda_.1} parent=11 // pred_fallthru
          _
        // Predicated region
        $region17: #{_lambda_.1} parent=11 // pred_check
          %p180 = pneg %p86
        $region18: #{_lambda_.1} parent=11 // pred_check_branch
          %182 = sbr.rel (%p180) target = $region20
        $region19: #{_lambda_.1} parent=11 // pred_region
          _
        $region20: #{_lambda_.1} parent=11 // pred_fallthru
          _
        // Predicated region
        $region21: #{_lambda_.1} parent=11 // pred_check
          %p183 = pneg %p107
        $region22: #{_lambda_.1} parent=11 // pred_check_branch
          %185 = sbr.rel (%p183) target = $region24
        $region23: #{_lambda_.1} parent=11 // pred_region
          _
        $region24: #{_lambda_.1} parent=11 // pred_fallthru
          _
        // Predicated region
        $region25: #{_lambda_.1} parent=11 // pred_check
          %p186 = pneg %p128
        $region26: #{_lambda_.1} parent=11 // pred_check_branch
          %188 = sbr.rel (%p186) target = $region28
        $region27: #{_lambda_.1} parent=11 // pred_region
          _
        $region28: #{_lambda_.1} parent=11 // pred_fallthru
          _
      $region12: #{_lambda_.1} parent=5 // pred_fallthru
        _
      %p189 = scmp.lt.s32.totalorder %s18, 2
      // Predicated region
      $region29: #{_lambda_.1} parent=5 // pred_check
        %p190 = pneg %p189
      $region30: #{_lambda_.1} parent=5 // pred_check_branch
        %192 = sbr.rel (%p190) target = $region32
      $region31: #{_lambda_.1} parent=5 // pred_region
        // Predicated region
        $region33: #{_lambda_.1} parent=31 // pred_check
          %p193 = pneg %p38
        $region34: #{_lambda_.1} parent=31 // pred_check_branch
          %195 = sbr.rel (%p193) target = $region36
        $region35: #{_lambda_.1} parent=31 // pred_region
          %s196 = sand.u32 %s28, 1
          %s197 = scalar_lea.sflag [#allocation3], %s196
          %s198 = sand.u32 %s28, 1
          %s199 = smul.addr %s198, 1024
          %s200 = scalar_lea.vmem [#allocation2], %s199
          %s201 = smul.u32 4, %s18
          %s203 = ssub.s32 16384, 16384
          %204 = vsyncadd %s197, %s203
          %s205 = smul.addr %s201, 32
          %s206 = smul.addr %s205, 128
          %s207 = scalar_lea.hbm %s0, %s206
          %s208 = sshll.u32 %s200, 4
          %s209 = int_to_ptr.vmem [resolvable:$true] %s208
          %214 = dma.hbm_to_vmem [thread:$0]  %s207, 16384, %s209, %s197, 128, 128, 8
        $region36: #{_lambda_.1} parent=31 // pred_fallthru
          _
      $region32: #{_lambda_.1} parent=5 // pred_fallthru
        _
      %p215 = scmp.le.s32.totalorder 1, %s18
      %p216 = scmp.lt.s32.totalorder %s18, 3
      %p217 = pnand %p215, %p216
      %p218 = pneg %p217
      // Predicated region
      $region37: #{_lambda_.1} parent=5 // pred_check
        _
      $region38: #{_lambda_.1} parent=5 // pred_check_branch
        %220 = sbr.rel (%p217) target = $region40
      $region39: #{_lambda_.1} parent=5 // pred_region
        %s221 = ssub.s32 %s18, 1
        %s222 = sand.u32 %s31, 1
        %s223 = scalar_lea.sflag [#allocation3], %s222
        %s224 = sand.u32 %s31, 1
        %s225 = smul.addr %s224, 1024
        %s226 = scalar_lea.vmem [#allocation2], %s225
        // Predicated region
        $region41: #{_lambda_.1} parent=39 // pred_check
          %p227 = pneg %p44
        $region42: #{_lambda_.1} parent=39 // pred_check_branch
          %229 = sbr.rel (%p227) target = $region44
        $region43: #{_lambda_.1} parent=39 // pred_region
          %230 = dma.done %s223, 16384
        $region44: #{_lambda_.1} parent=39 // pred_fallthru
          _
        // Predicated region
        $region45: #{_lambda_.1} parent=39 // pred_check
          %p231 = pneg %p65
        $region46: #{_lambda_.1} parent=39 // pred_check_branch
          %233 = sbr.rel (%p231) target = $region48
        $region47: #{_lambda_.1} parent=39 // pred_region
          %234 = dma.done [#allocation6], 128
        $region48: #{_lambda_.1} parent=39 // pred_fallthru
          _
        %s235 = sand.u32 %s31, 1
        %s236 = scalar_lea.sflag [#allocation3], %s235
        %s237 = sand.u32 %s31, 1
        %s238 = smul.addr %s237, 1024
        %s239 = scalar_lea.vmem [#allocation2], %s238
        %p240 = pneg %p44
        %p241 = pneg %p41
        %p242 = pneg %p65
        %p243 = pneg %p62
        %p244 = pneg %p86
        %p245 = pneg %p83
        %p246 = pneg %p107
        %p247 = pneg %p104
        %p248 = pneg %p128
        %p249 = pneg %p125
        %p250 = pneg %p154
        %p251 = pneg %p151
        %s252 = sand.u32 %s141, 1
        %s253 = scalar_lea.sflag [#allocation4], %s252
        %s254 = sand.u32 %s141, 1
        %s255 = smul.addr %s254, 1024
        %s256 = scalar_lea.vmem [#allocation7], %s255
        %s257 = smul.u32 4, %s23
        %s258 = smul.u32 4, %s23
        %v259 = vld [vmem:[%s226] sm:$0xff]
        %v260 = vld [vmem:[%s226 + $0x8] sm:$0xff]
        %v261 = vld [vmem:[%s226 + $0x10] sm:$0xff]
        %v262 = vld [vmem:[%s226 + $0x18] sm:$0xff]
        %v263 = vld [vmem:[%s226 + $0x20] sm:$0xff]
        %v264 = vld [vmem:[%s226 + $0x28] sm:$0xff]
        %v265 = vld [vmem:[%s226 + $0x30] sm:$0xff]
        %v266 = vld [vmem:[%s226 + $0x38] sm:$0xff]
        %v267 = vld [vmem:[%s226 + $0x40] sm:$0xff]
        %v268 = vld [vmem:[%s226 + $0x48] sm:$0xff]
        %v269 = vld [vmem:[%s226 + $0x50] sm:$0xff]
        %v270 = vld [vmem:[%s226 + $0x58] sm:$0xff]
        %v271 = vld [vmem:[%s226 + $0x60] sm:$0xff]
        %v272 = vld [vmem:[%s226 + $0x68] sm:$0xff]
        %v273 = vld [vmem:[%s226 + $0x70] sm:$0xff]
        %v274 = vld [vmem:[%s226 + $0x78] sm:$0xff]
        %v275 = vld [vmem:[%s226 + $0x80] sm:$0xff]
        %v276 = vld [vmem:[%s226 + $0x88] sm:$0xff]
        %v277 = vld [vmem:[%s226 + $0x90] sm:$0xff]
        %v278 = vld [vmem:[%s226 + $0x98] sm:$0xff]
        %v279 = vld [vmem:[%s226 + $0xa0] sm:$0xff]
        %v280 = vld [vmem:[%s226 + $0xa8] sm:$0xff]
        %v281 = vld [vmem:[%s226 + $0xb0] sm:$0xff]
        %v282 = vld [vmem:[%s226 + $0xb8] sm:$0xff]
        %v283 = vld [vmem:[%s226 + $0xc0] sm:$0xff]
        %v284 = vld [vmem:[%s226 + $0xc8] sm:$0xff]
        %v285 = vld [vmem:[%s226 + $0xd0] sm:$0xff]
        %v286 = vld [vmem:[%s226 + $0xd8] sm:$0xff]
        %v287 = vld [vmem:[%s226 + $0xe0] sm:$0xff]
        %v288 = vld [vmem:[%s226 + $0xe8] sm:$0xff]
        %v289 = vld [vmem:[%s226 + $0xf0] sm:$0xff]
        %v290 = vld [vmem:[%s226 + $0xf8] sm:$0xff]
        %v291 = vld [vmem:[%s226 + $0x100] sm:$0xff]
        %v292 = vld [vmem:[%s226 + $0x108] sm:$0xff]
        %v293 = vld [vmem:[%s226 + $0x110] sm:$0xff]
        %v294 = vld [vmem:[%s226 + $0x118] sm:$0xff]
        %v295 = vld [vmem:[%s226 + $0x120] sm:$0xff]
        %v296 = vld [vmem:[%s226 + $0x128] sm:$0xff]
        %v297 = vld [vmem:[%s226 + $0x130] sm:$0xff]
        %v298 = vld [vmem:[%s226 + $0x138] sm:$0xff]
        %v299 = vld [vmem:[%s226 + $0x140] sm:$0xff]
        %v300 = vld [vmem:[%s226 + $0x148] sm:$0xff]
        %v301 = vld [vmem:[%s226 + $0x150] sm:$0xff]
        %v302 = vld [vmem:[%s226 + $0x158] sm:$0xff]
        %v303 = vld [vmem:[%s226 + $0x160] sm:$0xff]
        %v304 = vld [vmem:[%s226 + $0x168] sm:$0xff]
        %v305 = vld [vmem:[%s226 + $0x170] sm:$0xff]
        %v306 = vld [vmem:[%s226 + $0x178] sm:$0xff]
        %v307 = vld [vmem:[%s226 + $0x180] sm:$0xff]
        %v308 = vld [vmem:[%s226 + $0x188] sm:$0xff]
        %v309 = vld [vmem:[%s226 + $0x190] sm:$0xff]
        %v310 = vld [vmem:[%s226 + $0x198] sm:$0xff]
        %v311 = vld [vmem:[%s226 + $0x1a0] sm:$0xff]
        %v312 = vld [vmem:[%s226 + $0x1a8] sm:$0xff]
        %v313 = vld [vmem:[%s226 + $0x1b0] sm:$0xff]
        %v314 = vld [vmem:[%s226 + $0x1b8] sm:$0xff]
        %v315 = vld [vmem:[%s226 + $0x1c0] sm:$0xff]
        %v316 = vld [vmem:[%s226 + $0x1c8] sm:$0xff]
        %v317 = vld [vmem:[%s226 + $0x1d0] sm:$0xff]
        %v318 = vld [vmem:[%s226 + $0x1d8] sm:$0xff]
        %v319 = vld [vmem:[%s226 + $0x1e0] sm:$0xff]
        %v320 = vld [vmem:[%s226 + $0x1e8] sm:$0xff]
        %v321 = vld [vmem:[%s226 + $0x1f0] sm:$0xff]
        %v322 = vld [vmem:[%s226 + $0x1f8] sm:$0xff]
        %v323 = vld [vmem:[%s226 + $0x200] sm:$0xff]
        %v324 = vld [vmem:[%s226 + $0x208] sm:$0xff]
        %v325 = vld [vmem:[%s226 + $0x210] sm:$0xff]
        %v326 = vld [vmem:[%s226 + $0x218] sm:$0xff]
        %v327 = vld [vmem:[%s226 + $0x220] sm:$0xff]
        %v328 = vld [vmem:[%s226 + $0x228] sm:$0xff]
        %v329 = vld [vmem:[%s226 + $0x230] sm:$0xff]
        %v330 = vld [vmem:[%s226 + $0x238] sm:$0xff]
        %v331 = vld [vmem:[%s226 + $0x240] sm:$0xff]
        %v332 = vld [vmem:[%s226 + $0x248] sm:$0xff]
        %v333 = vld [vmem:[%s226 + $0x250] sm:$0xff]
        %v334 = vld [vmem:[%s226 + $0x258] sm:$0xff]
        %v335 = vld [vmem:[%s226 + $0x260] sm:$0xff]
        %v336 = vld [vmem:[%s226 + $0x268] sm:$0xff]
        %v337 = vld [vmem:[%s226 + $0x270] sm:$0xff]
        %v338 = vld [vmem:[%s226 + $0x278] sm:$0xff]
        %v339 = vld [vmem:[%s226 + $0x280] sm:$0xff]
        %v340 = vld [vmem:[%s226 + $0x288] sm:$0xff]
        %v341 = vld [vmem:[%s226 + $0x290] sm:$0xff]
        %v342 = vld [vmem:[%s226 + $0x298] sm:$0xff]
        %v343 = vld [vmem:[%s226 + $0x2a0] sm:$0xff]
        %v344 = vld [vmem:[%s226 + $0x2a8] sm:$0xff]
        %v345 = vld [vmem:[%s226 + $0x2b0] sm:$0xff]
        %v346 = vld [vmem:[%s226 + $0x2b8] sm:$0xff]
        %v347 = vld [vmem:[%s226 + $0x2c0] sm:$0xff]
        %v348 = vld [vmem:[%s226 + $0x2c8] sm:$0xff]
        %v349 = vld [vmem:[%s226 + $0x2d0] sm:$0xff]
        %v350 = vld [vmem:[%s226 + $0x2d8] sm:$0xff]
        %v351 = vld [vmem:[%s226 + $0x2e0] sm:$0xff]
        %v352 = vld [vmem:[%s226 + $0x2e8] sm:$0xff]
        %v353 = vld [vmem:[%s226 + $0x2f0] sm:$0xff]
        %v354 = vld [vmem:[%s226 + $0x2f8] sm:$0xff]
        %v355 = vld [vmem:[%s226 + $0x300] sm:$0xff]
        %v356 = vld [vmem:[%s226 + $0x308] sm:$0xff]
        %v357 = vld [vmem:[%s226 + $0x310] sm:$0xff]
        %v358 = vld [vmem:[%s226 + $0x318] sm:$0xff]
        %v359 = vld [vmem:[%s226 + $0x320] sm:$0xff]
        %v360 = vld [vmem:[%s226 + $0x328] sm:$0xff]
        %v361 = vld [vmem:[%s226 + $0x330] sm:$0xff]
        %v362 = vld [vmem:[%s226 + $0x338] sm:$0xff]
        %v363 = vld [vmem:[%s226 + $0x340] sm:$0xff]
        %v364 = vld [vmem:[%s226 + $0x348] sm:$0xff]
        %v365 = vld [vmem:[%s226 + $0x350] sm:$0xff]
        %v366 = vld [vmem:[%s226 + $0x358] sm:$0xff]
        %v367 = vld [vmem:[%s226 + $0x360] sm:$0xff]
        %v368 = vld [vmem:[%s226 + $0x368] sm:$0xff]
        %v369 = vld [vmem:[%s226 + $0x370] sm:$0xff]
        %v370 = vld [vmem:[%s226 + $0x378] sm:$0xff]
        %v371 = vld [vmem:[%s226 + $0x380] sm:$0xff]
        %v372 = vld [vmem:[%s226 + $0x388] sm:$0xff]
        %v373 = vld [vmem:[%s226 + $0x390] sm:$0xff]
        %v374 = vld [vmem:[%s226 + $0x398] sm:$0xff]
        %v375 = vld [vmem:[%s226 + $0x3a0] sm:$0xff]
        %v376 = vld [vmem:[%s226 + $0x3a8] sm:$0xff]
        %v377 = vld [vmem:[%s226 + $0x3b0] sm:$0xff]
        %v378 = vld [vmem:[%s226 + $0x3b8] sm:$0xff]
        %v379 = vld [vmem:[%s226 + $0x3c0] sm:$0xff]
        %v380 = vld [vmem:[%s226 + $0x3c8] sm:$0xff]
        %v381 = vld [vmem:[%s226 + $0x3d0] sm:$0xff]
        %v382 = vld [vmem:[%s226 + $0x3d8] sm:$0xff]
        %v383 = vld [vmem:[%s226 + $0x3e0] sm:$0xff]
        %v384 = vld [vmem:[%s226 + $0x3e8] sm:$0xff]
        %v385 = vld [vmem:[%s226 + $0x3f0] sm:$0xff]
        %v386 = vld [vmem:[%s226 + $0x3f8] sm:$0xff]
        %v387 = vadd.f32 %v259, %v260
        %v388 = vadd.f32 %v387, %v261
        %v389 = vadd.f32 %v388, %v262
        %v390 = vadd.f32 %v389, %v263
        %v391 = vadd.f32 %v390, %v264
        %v392 = vadd.f32 %v391, %v265
        %v393 = vadd.f32 %v392, %v266
        %v394 = vadd.f32 %v393, %v267
        %v395 = vadd.f32 %v394, %v268
        %v396 = vadd.f32 %v395, %v269
        %v397 = vadd.f32 %v396, %v270
        %v398 = vadd.f32 %v397, %v271
        %v399 = vadd.f32 %v398, %v272
        %v400 = vadd.f32 %v399, %v273
        %v401 = vadd.f32 %v400, %v274
        %v402 = vadd.f32 %v401, %v275
        %v403 = vadd.f32 %v402, %v276
        %v404 = vadd.f32 %v403, %v277
        %v405 = vadd.f32 %v404, %v278
        %v406 = vadd.f32 %v405, %v279
        %v407 = vadd.f32 %v406, %v280
        %v408 = vadd.f32 %v407, %v281
        %v409 = vadd.f32 %v408, %v282
        %v410 = vadd.f32 %v409, %v283
        %v411 = vadd.f32 %v410, %v284
        %v412 = vadd.f32 %v411, %v285
        %v413 = vadd.f32 %v412, %v286
        %v414 = vadd.f32 %v413, %v287
        %v415 = vadd.f32 %v414, %v288
        %v416 = vadd.f32 %v415, %v289
        %v417 = vadd.f32 %v416, %v290
        %v418 = vrot.slane %v417, 4
        %v419 = vadd.f32 %v417, %v418
        %v420 = vrot.slane %v419, 2
        %v421 = vadd.f32 %v419, %v420
        %v422 = vrot.slane %v421, 1
        %v423 = vadd.f32 %v421, %v422
        %v424 = vadd.f32 %v291, %v292
        %v425 = vadd.f32 %v424, %v293
        %v426 = vadd.f32 %v425, %v294
        %v427 = vadd.f32 %v426, %v295
        %v428 = vadd.f32 %v427, %v296
        %v429 = vadd.f32 %v428, %v297
        %v430 = vadd.f32 %v429, %v298
        %v431 = vadd.f32 %v430, %v299
        %v432 = vadd.f32 %v431, %v300
        %v433 = vadd.f32 %v432, %v301
        %v434 = vadd.f32 %v433, %v302
        %v435 = vadd.f32 %v434, %v303
        %v436 = vadd.f32 %v435, %v304
        %v437 = vadd.f32 %v436, %v305
        %v438 = vadd.f32 %v437, %v306
        %v439 = vadd.f32 %v438, %v307
        %v440 = vadd.f32 %v439, %v308
        %v441 = vadd.f32 %v440, %v309
        %v442 = vadd.f32 %v441, %v310
        %v443 = vadd.f32 %v442, %v311
        %v444 = vadd.f32 %v443, %v312
        %v445 = vadd.f32 %v444, %v313
        %v446 = vadd.f32 %v445, %v314
        %v447 = vadd.f32 %v446, %v315
        %v448 = vadd.f32 %v447, %v316
        %v449 = vadd.f32 %v448, %v317
        %v450 = vadd.f32 %v449, %v318
        %v451 = vadd.f32 %v450, %v319
        %v452 = vadd.f32 %v451, %v320
        %v453 = vadd.f32 %v452, %v321
        %v454 = vadd.f32 %v453, %v322
        %v455 = vrot.slane %v454, 4
        %v456 = vadd.f32 %v454, %v455
        %v457 = vrot.slane %v456, 2
        %v458 = vadd.f32 %v456, %v457
        %v459 = vrot.slane %v458, 1
        %v460 = vadd.f32 %v458, %v459
        %v461 = vadd.f32 %v323, %v324
        %v462 = vadd.f32 %v461, %v325
        %v463 = vadd.f32 %v462, %v326
        %v464 = vadd.f32 %v463, %v327
        %v465 = vadd.f32 %v464, %v328
        %v466 = vadd.f32 %v465, %v329
        %v467 = vadd.f32 %v466, %v330
        %v468 = vadd.f32 %v467, %v331
        %v469 = vadd.f32 %v468, %v332
        %v470 = vadd.f32 %v469, %v333
        %v471 = vadd.f32 %v470, %v334
        %v472 = vadd.f32 %v471, %v335
        %v473 = vadd.f32 %v472, %v336
        %v474 = vadd.f32 %v473, %v337
        %v475 = vadd.f32 %v474, %v338
        %v476 = vadd.f32 %v475, %v339
        %v477 = vadd.f32 %v476, %v340
        %v478 = vadd.f32 %v477, %v341
        %v479 = vadd.f32 %v478, %v342
        %v480 = vadd.f32 %v479, %v343
        %v481 = vadd.f32 %v480, %v344
        %v482 = vadd.f32 %v481, %v345
        %v483 = vadd.f32 %v482, %v346
        %v484 = vadd.f32 %v483, %v347
        %v485 = vadd.f32 %v484, %v348
        %v486 = vadd.f32 %v485, %v349
        %v487 = vadd.f32 %v486, %v350
        %v488 = vadd.f32 %v487, %v351
        %v489 = vadd.f32 %v488, %v352
        %v490 = vadd.f32 %v489, %v353
        %v491 = vadd.f32 %v490, %v354
        %v492 = vrot.slane %v491, 4
        %v493 = vadd.f32 %v491, %v492
        %v494 = vrot.slane %v493, 2
        %v495 = vadd.f32 %v493, %v494
        %v496 = vrot.slane %v495, 1
        %v497 = vadd.f32 %v495, %v496
        %v498 = vadd.f32 %v355, %v356
        %v499 = vadd.f32 %v498, %v357
        %v500 = vadd.f32 %v499, %v358
        %v501 = vadd.f32 %v500, %v359
        %v502 = vadd.f32 %v501, %v360
        %v503 = vadd.f32 %v502, %v361
        %v504 = vadd.f32 %v503, %v362
        %v505 = vadd.f32 %v504, %v363
        %v506 = vadd.f32 %v505, %v364
        %v507 = vadd.f32 %v506, %v365
        %v508 = vadd.f32 %v507, %v366
        %v509 = vadd.f32 %v508, %v367
        %v510 = vadd.f32 %v509, %v368
        %v511 = vadd.f32 %v510, %v369
        %v512 = vadd.f32 %v511, %v370
        %v513 = vadd.f32 %v512, %v371
        %v514 = vadd.f32 %v513, %v372
        %v515 = vadd.f32 %v514, %v373
        %v516 = vadd.f32 %v515, %v374
        %v517 = vadd.f32 %v516, %v375
        %v518 = vadd.f32 %v517, %v376
        %v519 = vadd.f32 %v518, %v377
        %v520 = vadd.f32 %v519, %v378
        %v521 = vadd.f32 %v520, %v379
        %v522 = vadd.f32 %v521, %v380
        %v523 = vadd.f32 %v522, %v381
        %v524 = vadd.f32 %v523, %v382
        %v525 = vadd.f32 %v524, %v383
        %v526 = vadd.f32 %v525, %v384
        %v527 = vadd.f32 %v526, %v385
        %v528 = vadd.f32 %v527, %v386
        %v529 = vrot.slane %v528, 4
        %v530 = vadd.f32 %v528, %v529
        %v531 = vrot.slane %v530, 2
        %v532 = vadd.f32 %v530, %v531
        %v533 = vrot.slane %v532, 1
        %v534 = vadd.f32 %v532, %v533
        %v535 = vmul.f32 %v259, %v259
        %v536 = vmul.f32 %v260, %v260
        %v537 = vmul.f32 %v261, %v261
        %v538 = vmul.f32 %v262, %v262
        %v539 = vmul.f32 %v263, %v263
        %v540 = vmul.f32 %v264, %v264
        %v541 = vmul.f32 %v265, %v265
        %v542 = vmul.f32 %v266, %v266
        %v543 = vmul.f32 %v267, %v267
        %v544 = vmul.f32 %v268, %v268
        %v545 = vmul.f32 %v269, %v269
        %v546 = vmul.f32 %v270, %v270
        %v547 = vmul.f32 %v271, %v271
        %v548 = vmul.f32 %v272, %v272
        %v549 = vmul.f32 %v273, %v273
        %v550 = vmul.f32 %v274, %v274
        %v551 = vmul.f32 %v275, %v275
        %v552 = vmul.f32 %v276, %v276
        %v553 = vmul.f32 %v277, %v277
        %v554 = vmul.f32 %v278, %v278
        %v555 = vmul.f32 %v279, %v279
        %v556 = vmul.f32 %v280, %v280
        %v557 = vmul.f32 %v281, %v281
        %v558 = vmul.f32 %v282, %v282
        %v559 = vmul.f32 %v283, %v283
        %v560 = vmul.f32 %v284, %v284
        %v561 = vmul.f32 %v285, %v285
        %v562 = vmul.f32 %v286, %v286
        %v563 = vmul.f32 %v287, %v287
        %v564 = vmul.f32 %v288, %v288
        %v565 = vmul.f32 %v289, %v289
        %v566 = vmul.f32 %v290, %v290
        %v567 = vmul.f32 %v291, %v291
        %v568 = vmul.f32 %v292, %v292
        %v569 = vmul.f32 %v293, %v293
        %v570 = vmul.f32 %v294, %v294
        %v571 = vmul.f32 %v295, %v295
        %v572 = vmul.f32 %v296, %v296
        %v573 = vmul.f32 %v297, %v297
        %v574 = vmul.f32 %v298, %v298
        %v575 = vmul.f32 %v299, %v299
        %v576 = vmul.f32 %v300, %v300
        %v577 = vmul.f32 %v301, %v301
        %v578 = vmul.f32 %v302, %v302
        %v579 = vmul.f32 %v303, %v303
        %v580 = vmul.f32 %v304, %v304
        %v581 = vmul.f32 %v305, %v305
        %v582 = vmul.f32 %v306, %v306
        %v583 = vmul.f32 %v307, %v307
        %v584 = vmul.f32 %v308, %v308
        %v585 = vmul.f32 %v309, %v309
        %v586 = vmul.f32 %v310, %v310
        %v587 = vmul.f32 %v311, %v311
        %v588 = vmul.f32 %v312, %v312
        %v589 = vmul.f32 %v313, %v313
        %v590 = vmul.f32 %v314, %v314
        %v591 = vmul.f32 %v315, %v315
        %v592 = vmul.f32 %v316, %v316
        %v593 = vmul.f32 %v317, %v317
        %v594 = vmul.f32 %v318, %v318
        %v595 = vmul.f32 %v319, %v319
        %v596 = vmul.f32 %v320, %v320
        %v597 = vmul.f32 %v321, %v321
        %v598 = vmul.f32 %v322, %v322
        %v599 = vmul.f32 %v323, %v323
        %v600 = vmul.f32 %v324, %v324
        %v601 = vmul.f32 %v325, %v325
        %v602 = vmul.f32 %v326, %v326
        %v603 = vmul.f32 %v327, %v327
        %v604 = vmul.f32 %v328, %v328
        %v605 = vmul.f32 %v329, %v329
        %v606 = vmul.f32 %v330, %v330
        %v607 = vmul.f32 %v331, %v331
        %v608 = vmul.f32 %v332, %v332
        %v609 = vmul.f32 %v333, %v333
        %v610 = vmul.f32 %v334, %v334
        %v611 = vmul.f32 %v335, %v335
        %v612 = vmul.f32 %v336, %v336
        %v613 = vmul.f32 %v337, %v337
        %v614 = vmul.f32 %v338, %v338
        %v615 = vmul.f32 %v339, %v339
        %v616 = vmul.f32 %v340, %v340
        %v617 = vmul.f32 %v341, %v341
        %v618 = vmul.f32 %v342, %v342
        %v619 = vmul.f32 %v343, %v343
        %v620 = vmul.f32 %v344, %v344
        %v621 = vmul.f32 %v345, %v345
        %v622 = vmul.f32 %v346, %v346
        %v623 = vmul.f32 %v347, %v347
        %v624 = vmul.f32 %v348, %v348
        %v625 = vmul.f32 %v349, %v349
        %v626 = vmul.f32 %v350, %v350
        %v627 = vmul.f32 %v351, %v351
        %v628 = vmul.f32 %v352, %v352
        %v629 = vmul.f32 %v353, %v353
        %v630 = vmul.f32 %v354, %v354
        %v631 = vmul.f32 %v355, %v355
        %v632 = vmul.f32 %v356, %v356
        %v633 = vmul.f32 %v357, %v357
        %v634 = vmul.f32 %v358, %v358
        %v635 = vmul.f32 %v359, %v359
        %v636 = vmul.f32 %v360, %v360
        %v637 = vmul.f32 %v361, %v361
        %v638 = vmul.f32 %v362, %v362
        %v639 = vmul.f32 %v363, %v363
        %v640 = vmul.f32 %v364, %v364
        %v641 = vmul.f32 %v365, %v365
        %v642 = vmul.f32 %v366, %v366
        %v643 = vmul.f32 %v367, %v367
        %v644 = vmul.f32 %v368, %v368
        %v645 = vmul.f32 %v369, %v369
        %v646 = vmul.f32 %v370, %v370
        %v647 = vmul.f32 %v371, %v371
        %v648 = vmul.f32 %v372, %v372
        %v649 = vmul.f32 %v373, %v373
        %v650 = vmul.f32 %v374, %v374
        %v651 = vmul.f32 %v375, %v375
        %v652 = vmul.f32 %v376, %v376
        %v653 = vmul.f32 %v377, %v377
        %v654 = vmul.f32 %v378, %v378
        %v655 = vmul.f32 %v379, %v379
        %v656 = vmul.f32 %v380, %v380
        %v657 = vmul.f32 %v381, %v381
        %v658 = vmul.f32 %v382, %v382
        %v659 = vmul.f32 %v383, %v383
        %v660 = vmul.f32 %v384, %v384
        %v661 = vmul.f32 %v385, %v385
        %v662 = vmul.f32 %v386, %v386
        %v663 = vadd.f32 %v535, %v536
        %v664 = vadd.f32 %v663, %v537
        %v665 = vadd.f32 %v664, %v538
        %v666 = vadd.f32 %v665, %v539
        %v667 = vadd.f32 %v666, %v540
        %v668 = vadd.f32 %v667, %v541
        %v669 = vadd.f32 %v668, %v542
        %v670 = vadd.f32 %v669, %v543
        %v671 = vadd.f32 %v670, %v544
        %v672 = vadd.f32 %v671, %v545
        %v673 = vadd.f32 %v672, %v546
        %v674 = vadd.f32 %v673, %v547
        %v675 = vadd.f32 %v674, %v548
        %v676 = vadd.f32 %v675, %v549
        %v677 = vadd.f32 %v676, %v550
        %v678 = vadd.f32 %v677, %v551
        %v679 = vadd.f32 %v678, %v552
        %v680 = vadd.f32 %v679, %v553
        %v681 = vadd.f32 %v680, %v554
        %v682 = vadd.f32 %v681, %v555
        %v683 = vadd.f32 %v682, %v556
        %v684 = vadd.f32 %v683, %v557
        %v685 = vadd.f32 %v684, %v558
        %v686 = vadd.f32 %v685, %v559
        %v687 = vadd.f32 %v686, %v560
        %v688 = vadd.f32 %v687, %v561
        %v689 = vadd.f32 %v688, %v562
        %v690 = vadd.f32 %v689, %v563
        %v691 = vadd.f32 %v690, %v564
        %v692 = vadd.f32 %v691, %v565
        %v693 = vadd.f32 %v692, %v566
        %v694 = vrot.slane %v693, 4
        %v695 = vadd.f32 %v693, %v694
        %v696 = vrot.slane %v695, 2
        %v697 = vadd.f32 %v695, %v696
        %v698 = vrot.slane %v697, 1
        %v699 = vadd.f32 %v697, %v698
        %v700 = vadd.f32 %v567, %v568
        %v701 = vadd.f32 %v700, %v569
        %v702 = vadd.f32 %v701, %v570
        %v703 = vadd.f32 %v702, %v571
        %v704 = vadd.f32 %v703, %v572
        %v705 = vadd.f32 %v704, %v573
        %v706 = vadd.f32 %v705, %v574
        %v707 = vadd.f32 %v706, %v575
        %v708 = vadd.f32 %v707, %v576
        %v709 = vadd.f32 %v708, %v577
        %v710 = vadd.f32 %v709, %v578
        %v711 = vadd.f32 %v710, %v579
        %v712 = vadd.f32 %v711, %v580
        %v713 = vadd.f32 %v712, %v581
        %v714 = vadd.f32 %v713, %v582
        %v715 = vadd.f32 %v714, %v583
        %v716 = vadd.f32 %v715, %v584
        %v717 = vadd.f32 %v716, %v585
        %v718 = vadd.f32 %v717, %v586
        %v719 = vadd.f32 %v718, %v587
        %v720 = vadd.f32 %v719, %v588
        %v721 = vadd.f32 %v720, %v589
        %v722 = vadd.f32 %v721, %v590
        %v723 = vadd.f32 %v722, %v591
        %v724 = vadd.f32 %v723, %v592
        %v725 = vadd.f32 %v724, %v593
        %v726 = vadd.f32 %v725, %v594
        %v727 = vadd.f32 %v726, %v595
        %v728 = vadd.f32 %v727, %v596
        %v729 = vadd.f32 %v728, %v597
        %v730 = vadd.f32 %v729, %v598
        %v731 = vrot.slane %v730, 4
        %v732 = vadd.f32 %v730, %v731
        %v733 = vrot.slane %v732, 2
        %v734 = vadd.f32 %v732, %v733
        %v735 = vrot.slane %v734, 1
        %v736 = vadd.f32 %v734, %v735
        %v737 = vadd.f32 %v599, %v600
        %v738 = vadd.f32 %v737, %v601
        %v739 = vadd.f32 %v738, %v602
        %v740 = vadd.f32 %v739, %v603
        %v741 = vadd.f32 %v740, %v604
        %v742 = vadd.f32 %v741, %v605
        %v743 = vadd.f32 %v742, %v606
        %v744 = vadd.f32 %v743, %v607
        %v745 = vadd.f32 %v744, %v608
        %v746 = vadd.f32 %v745, %v609
        %v747 = vadd.f32 %v746, %v610
        %v748 = vadd.f32 %v747, %v611
        %v749 = vadd.f32 %v748, %v612
        %v750 = vadd.f32 %v749, %v613
        %v751 = vadd.f32 %v750, %v614
        %v752 = vadd.f32 %v751, %v615
        %v753 = vadd.f32 %v752, %v616
        %v754 = vadd.f32 %v753, %v617
        %v755 = vadd.f32 %v754, %v618
        %v756 = vadd.f32 %v755, %v619
        %v757 = vadd.f32 %v756, %v620
        %v758 = vadd.f32 %v757, %v621
        %v759 = vadd.f32 %v758, %v622
        %v760 = vadd.f32 %v759, %v623
        %v761 = vadd.f32 %v760, %v624
        %v762 = vadd.f32 %v761, %v625
        %v763 = vadd.f32 %v762, %v626
        %v764 = vadd.f32 %v763, %v627
        %v765 = vadd.f32 %v764, %v628
        %v766 = vadd.f32 %v765, %v629
        %v767 = vadd.f32 %v766, %v630
        %v768 = vrot.slane %v767, 4
        %v769 = vadd.f32 %v767, %v768
        %v770 = vrot.slane %v769, 2
        %v771 = vadd.f32 %v769, %v770
        %v772 = vrot.slane %v771, 1
        %v773 = vadd.f32 %v771, %v772
        %v774 = vadd.f32 %v631, %v632
        %v775 = vadd.f32 %v774, %v633
        %v776 = vadd.f32 %v775, %v634
        %v777 = vadd.f32 %v776, %v635
        %v778 = vadd.f32 %v777, %v636
        %v779 = vadd.f32 %v778, %v637
        %v780 = vadd.f32 %v779, %v638
        %v781 = vadd.f32 %v780, %v639
        %v782 = vadd.f32 %v781, %v640
        %v783 = vadd.f32 %v782, %v641
        %v784 = vadd.f32 %v783, %v642
        %v785 = vadd.f32 %v784, %v643
        %v786 = vadd.f32 %v785, %v644
        %v787 = vadd.f32 %v786, %v645
        %v788 = vadd.f32 %v787, %v646
        %v789 = vadd.f32 %v788, %v647
        %v790 = vadd.f32 %v789, %v648
        %v791 = vadd.f32 %v790, %v649
        %v792 = vadd.f32 %v791, %v650
        %v793 = vadd.f32 %v792, %v651
        %v794 = vadd.f32 %v793, %v652
        %v795 = vadd.f32 %v794, %v653
        %v796 = vadd.f32 %v795, %v654
        %v797 = vadd.f32 %v796, %v655
        %v798 = vadd.f32 %v797, %v656
        %v799 = vadd.f32 %v798, %v657
        %v800 = vadd.f32 %v799, %v658
        %v801 = vadd.f32 %v800, %v659
        %v802 = vadd.f32 %v801, %v660
        %v803 = vadd.f32 %v802, %v661
        %v804 = vadd.f32 %v803, %v662
        %v805 = vrot.slane %v804, 4
        %v806 = vadd.f32 %v804, %v805
        %v807 = vrot.slane %v806, 2
        %v808 = vadd.f32 %v806, %v807
        %v809 = vrot.slane %v808, 1
        %v810 = vadd.f32 %v808, %v809
        %v811 = vmul.f32 %v423, 0.00390625
        %v812 = vmul.f32 %v460, 0.00390625
        %v813 = vmul.f32 %v497, 0.00390625
        %v814 = vmul.f32 %v534, 0.00390625
        %v815 = vmul.f32 %v699, 0.00390625
        %v816 = vmul.f32 %v736, 0.00390625
        %v817 = vmul.f32 %v773, 0.00390625
        %v818 = vmul.f32 %v810, 0.00390625
        %v819 = vmul.f32 %v811, %v811
        %v820 = vmul.f32 %v812, %v812
        %v821 = vmul.f32 %v813, %v813
        %v822 = vmul.f32 %v814, %v814
        %v823 = vsub.f32 %v815, %v819
        %v824 = vsub.f32 %v816, %v820
        %v825 = vsub.f32 %v817, %v821
        %v826 = vsub.f32 %v818, %v822
        %v827 = vmax.f32 %v823, 0.0
        %v828 = vmax.f32 %v824, 0.0
        %v829 = vmax.f32 %v825, 0.0
        %v830 = vmax.f32 %v826, 0.0
        %v831 = vrsqrt.pop %v827
        %v832 = vmul.f32 %v827, %v831
        %vm833 = vcmp.eq.f32.partialorder %v827, inf
        %v834 = vsel %vm833, %v827, %v832
        %vm835 = vcmp.eq.f32.partialorder %v827, 0.0
        %v836 = vand.u32 %v827, 2147483648
        %v837 = vsel %vm835, %v836, %v834
        %v838 = vrsqrt.pop %v828
        %v839 = vmul.f32 %v828, %v838
        %vm840 = vcmp.eq.f32.partialorder %v828, inf
        %v841 = vsel %vm840, %v828, %v839
        %vm842 = vcmp.eq.f32.partialorder %v828, 0.0
        %v843 = vand.u32 %v828, 2147483648
        %v844 = vsel %vm842, %v843, %v841
        %v845 = vrsqrt.pop %v829
        %v846 = vmul.f32 %v829, %v845
        %vm847 = vcmp.eq.f32.partialorder %v829, inf
        %v848 = vsel %vm847, %v829, %v846
        %vm849 = vcmp.eq.f32.partialorder %v829, 0.0
        %v850 = vand.u32 %v829, 2147483648
        %v851 = vsel %vm849, %v850, %v848
        %v852 = vrsqrt.pop %v830
        %v853 = vmul.f32 %v830, %v852
        %vm854 = vcmp.eq.f32.partialorder %v830, inf
        %v855 = vsel %vm854, %v830, %v853
        %vm856 = vcmp.eq.f32.partialorder %v830, 0.0
        %v857 = vand.u32 %v830, 2147483648
        %v858 = vsel %vm856, %v857, %v855
        %v859 = vadd.f32 %v837, %v811
        %v860 = vadd.f32 %v844, %v812
        %v861 = vadd.f32 %v851, %v813
        %v862 = vadd.f32 %v858, %v814
        %v863 = vld [vmem:[#allocation5] sm:$0xff]
        %v864 = vld [vmem:[%s2] sm:$0x1]
        %v866 = vlaneseq
        %v867 = vshrl.u32 %v866, 7
        %v868 = vsub.s32 0, %v867
        %v869 = vrot.slane %v864, %v868
        %vm875 = vcmask 1041409
        %v876 = vsel %vm875, %v860, %v859
        %vm877 = vcmask 1042434
        %v878 = vsel %vm877, %v861, %v876
        %vm879 = vcmask 1043459
        %v880 = vsel %vm879, %v862, %v878
        %882 = vmatprep.subr.mxu0 0.0
        %883 = vmatpush1.xpose.msra.mxu0 %v863
        %884 = vmatprep.subr.mxu0 0.0
        %885 = vmatpush1.xpose.msra.mxu0 0.0
        %886 = vmatprep.subr.mxu0 0.0
        %887 = vmatpush1.xpose.msra.mxu0 0.0
        %888 = vmatprep.subr.mxu0 0.0
        %889 = vmatpush1.xpose.msra.mxu0 0.0
        %890 = vmatprep.subr.mxu0 0.0
        %891 = vmatpush1.xpose.msra.mxu0 0.0
        %892 = vmatprep.subr.mxu0 0.0
        %893 = vmatpush1.xpose.msra.mxu0 0.0
        %894 = vmatprep.subr.mxu0 0.0
        %895 = vmatpush1.xpose.msra.mxu0 0.0
        %896 = vmatprep.subr.mxu0 0.0
        %897 = vmatpush1.xpose.msra.mxu0 0.0
        %898 = vmatprep.subr.mxu0 0.0
        %899 = vmatpush1.xpose.msra.mxu0 0.0
        %900 = vmatprep.subr.mxu0 0.0
        %901 = vmatpush1.xpose.msra.mxu0 0.0
        %902 = vmatprep.subr.mxu0 0.0
        %903 = vmatpush1.xpose.msra.mxu0 0.0
        %904 = vmatprep.subr.mxu0 0.0
        %905 = vmatpush1.xpose.msra.mxu0 0.0
        %906 = vmatprep.subr.mxu0 0.0
        %907 = vmatpush1.xpose.msra.mxu0 0.0
        %908 = vmatprep.subr.mxu0 0.0
        %909 = vmatpush1.xpose.msra.mxu0 0.0
        %910 = vmatprep.subr.mxu0 0.0
        %911 = vmatpush1.xpose.msra.mxu0 0.0
        %912 = vmatprep.subr.mxu0 0.0
        %913 = vmatpush1.xpose.msra.mxu0 0.0
        %914 = vmatprep.subr.mxu0 0.0
        %915 = vmatpush1.xpose.msra.mxu0 0.0
        %916 = vmatprep.subr.mxu0 0.0
        %917 = vmatpush1.xpose.msra.mxu0 0.0
        %918 = vmatprep.subr.mxu0 0.0
        %919 = vmatpush1.xpose.msra.mxu0 0.0
        %920 = vmatprep.subr.mxu0 0.0
        %921 = vmatpush1.xpose.msra.mxu0 0.0
        %922 = vmatprep.subr.mxu0 0.0
        %923 = vmatpush1.xpose.msra.mxu0 0.0
        %924 = vmatprep.subr.mxu0 0.0
        %925 = vmatpush1.xpose.msra.mxu0 0.0
        %926 = vmatprep.subr.mxu0 0.0
        %927 = vmatpush1.xpose.msra.mxu0 0.0
        %928 = vmatprep.subr.mxu0 0.0
        %929 = vmatpush1.xpose.msra.mxu0 0.0
        %930 = vmatprep.subr.mxu0 0.0
        %931 = vmatpush1.xpose.msra.mxu0 0.0
        %932 = vmatprep.subr.mxu0 0.0
        %933 = vmatpush1.xpose.msra.mxu0 0.0
        %934 = vmatprep.subr.mxu0 0.0
        %935 = vmatpush1.xpose.msra.mxu0 0.0
        %936 = vmatprep.subr.mxu0 0.0
        %937 = vmatpush1.xpose.msra.mxu0 0.0
        %938 = vmatprep.subr.mxu0 0.0
        %939 = vmatpush1.xpose.msra.mxu0 0.0
        %940 = vmatprep.subr.mxu0 0.0
        %941 = vmatpush1.xpose.msra.mxu0 0.0
        %942 = vmatprep.subr.mxu0 0.0
        %943 = vmatpush1.xpose.msra.mxu0 0.0
        %944 = vmatprep.subr.mxu0 0.0
        %945 = vmatpush1.xpose.msra.mxu0 0.0
        %946 = vmatprep.mubr.f32.mxu0 0.0
        %947 = vmatmul.mubr.f32.gmra.mrb[0].mxu0 %v880
        %v948 = vpop.f32.mrb[0].mxu0
        %v949 = vadd.f32 %v869, %v948
        %v950 = vpop.f32.mrb[0].mxu0
        %951 = vdwg.mxu0
        %vm952 = vcmp.ge.f32.partialorder %v949, 0.0
        %v953 = vmul.f32 %v949, 0.05
        %v954 = vsel %vm952, %v949, %v953
        %v955 = vld [vmem:[%s3] sm:$0xff]
        %v956 = vld [vmem:[%s4] sm:$0x1]
        %v958 = vlaneseq
        %v959 = vshrl.u32 %v958, 7
        %v960 = vsub.s32 0, %v959
        %v961 = vrot.slane %v956, %v960
        %vm963 = vcmask 64512
        %v965 = vsel %vm963, %v954, 0
        %967 = vmatprep.subr.mxu0 0.0
        %968 = vmatpush1.msra.mxu0 %v955
        %969 = vmatprep.subr.mxu0 0.0
        %970 = vmatpush1.msra.mxu0 0.0
        %971 = vmatprep.subr.mxu0 0.0
        %972 = vmatpush1.msra.mxu0 0.0
        %973 = vmatprep.subr.mxu0 0.0
        %974 = vmatpush1.msra.mxu0 0.0
        %975 = vmatprep.subr.mxu0 0.0
        %976 = vmatpush1.msra.mxu0 0.0
        %977 = vmatprep.subr.mxu0 0.0
        %978 = vmatpush1.msra.mxu0 0.0
        %979 = vmatprep.subr.mxu0 0.0
        %980 = vmatpush1.msra.mxu0 0.0
        %981 = vmatprep.subr.mxu0 0.0
        %982 = vmatpush1.msra.mxu0 0.0
        %983 = vmatprep.subr.mxu0 0.0
        %984 = vmatpush1.msra.mxu0 0.0
        %985 = vmatprep.subr.mxu0 0.0
        %986 = vmatpush1.msra.mxu0 0.0
        %987 = vmatprep.subr.mxu0 0.0
        %988 = vmatpush1.msra.mxu0 0.0
        %989 = vmatprep.subr.mxu0 0.0
        %990 = vmatpush1.msra.mxu0 0.0
        %991 = vmatprep.subr.mxu0 0.0
        %992 = vmatpush1.msra.mxu0 0.0
        %993 = vmatprep.subr.mxu0 0.0
        %994 = vmatpush1.msra.mxu0 0.0
        %995 = vmatprep.subr.mxu0 0.0
        %996 = vmatpush1.msra.mxu0 0.0
        %997 = vmatprep.subr.mxu0 0.0
        %998 = vmatpush1.msra.mxu0 0.0
        %999 = vmatprep.subr.mxu0 0.0
        %1000 = vmatpush1.msra.mxu0 0.0
        %1001 = vmatprep.subr.mxu0 0.0
        %1002 = vmatpush1.msra.mxu0 0.0
        %1003 = vmatprep.subr.mxu0 0.0
        %1004 = vmatpush1.msra.mxu0 0.0
        %1005 = vmatprep.subr.mxu0 0.0
        %1006 = vmatpush1.msra.mxu0 0.0
        %1007 = vmatprep.subr.mxu0 0.0
        %1008 = vmatpush1.msra.mxu0 0.0
        %1009 = vmatprep.subr.mxu0 0.0
        %1010 = vmatpush1.msra.mxu0 0.0
        %1011 = vmatprep.subr.mxu0 0.0
        %1012 = vmatpush1.msra.mxu0 0.0
        %1013 = vmatprep.subr.mxu0 0.0
        %1014 = vmatpush1.msra.mxu0 0.0
        %1015 = vmatprep.subr.mxu0 0.0
        %1016 = vmatpush1.msra.mxu0 0.0
        %1017 = vmatprep.subr.mxu0 0.0
        %1018 = vmatpush1.msra.mxu0 0.0
        %1019 = vmatprep.subr.mxu0 0.0
        %1020 = vmatpush1.msra.mxu0 0.0
        %1021 = vmatprep.subr.mxu0 0.0
        %1022 = vmatpush1.msra.mxu0 0.0
        %1023 = vmatprep.subr.mxu0 0.0
        %1024 = vmatpush1.msra.mxu0 0.0
        %1025 = vmatprep.subr.mxu0 0.0
        %1026 = vmatpush1.msra.mxu0 0.0
        %1027 = vmatprep.subr.mxu0 0.0
        %1028 = vmatpush1.msra.mxu0 0.0
        %1029 = vmatprep.subr.mxu0 0.0
        %1030 = vmatpush1.msra.mxu0 0.0
        %1031 = vmatprep.mubr.f32.mxu0 0.0
        %1032 = vmatmul.mubr.f32.gmra.mrb[0].mxu0 %v965
        %v1033 = vpop.f32.mrb[0].mxu0
        %v1034 = vadd.f32 %v961, %v1033
        %v1035 = vpop.f32.mrb[0].mxu0
        %1036 = vdwg.mxu0
        %v1037 = vxor.u32 %v1034, 2147483648
        %v1038 = vmul.f32 %v1037, 1.442695
        %v1039 = vpow.pop %v1038
        %v1040 = vadd.f32 %v1039, 1.0
        %v1041 = vrcp.pop %v1040
        %v1042 = vmul.f32 1.0, %v1041
        %v1045 = vunpack.c.l.s4 1966171168
        %v1046 = vunpack.c.0.s8 %v1045
        %v1047 = vlaneseq
        %v1048 = vshrl.u32 %v1047, 7
        %v1049 = vsub.s32 %v1046, %v1048
        %v1050 = vrot.slane %v1042, %v1049
        %v1051 = vcombine.high %v1050, %v1050
        %v1053 = vunpack.c.l.s4 1966171168
        %v1054 = vunpack.c.0.s8 %v1053
        %v1055 = vlaneseq
        %v1056 = vshrl.u32 %v1055, 7
        %v1057 = vsub.s32 %v1054, %v1056
        %v1058 = vrot.slane %v1050, %v1057
        %v1060 = vunpack.c.l.s4 1966171168
        %v1061 = vunpack.c.0.s8 %v1060
        %v1062 = vlaneseq
        %v1063 = vshrl.u32 %v1062, 7
        %v1064 = vsub.s32 %v1061, %v1063
        %v1065 = vrot.slane %v1051, %v1064
        %v1066 = vcombine.high %v1058, %v1058
        %v1067 = vcombine.high %v1065, %v1065
        %v1068 = vlaneseq
        %v1069 = vshrl.u32 %v1068, 7
        %v1070 = vsub.s32 0, %v1069
        %v1071 = vrot.slane %v1058, %v1070
        %v1072 = vlaneseq
        %v1073 = vshrl.u32 %v1072, 7
        %v1074 = vsub.s32 0, %v1073
        %v1075 = vrot.slane %v1065, %v1074
        %v1076 = vlaneseq
        %v1077 = vshrl.u32 %v1076, 7
        %v1078 = vsub.s32 0, %v1077
        %v1079 = vrot.slane %v1066, %v1078
        %v1080 = vlaneseq
        %v1081 = vshrl.u32 %v1080, 7
        %v1082 = vsub.s32 0, %v1081
        %v1083 = vrot.slane %v1067, %v1082
        %v1088 = vmul.f32 %v259, %v1071
        %v1089 = vmul.f32 %v260, %v1071
        %v1090 = vmul.f32 %v261, %v1071
        %v1091 = vmul.f32 %v262, %v1071
        %v1092 = vmul.f32 %v263, %v1071
        %v1093 = vmul.f32 %v264, %v1071
        %v1094 = vmul.f32 %v265, %v1071
        %v1095 = vmul.f32 %v266, %v1071
        %v1096 = vmul.f32 %v267, %v1071
        %v1097 = vmul.f32 %v268, %v1071
        %v1098 = vmul.f32 %v269, %v1071
        %v1099 = vmul.f32 %v270, %v1071
        %v1100 = vmul.f32 %v271, %v1071
        %v1101 = vmul.f32 %v272, %v1071
        %v1102 = vmul.f32 %v273, %v1071
        %v1103 = vmul.f32 %v274, %v1071
        %v1104 = vmul.f32 %v275, %v1071
        %v1105 = vmul.f32 %v276, %v1071
        %v1106 = vmul.f32 %v277, %v1071
        %v1107 = vmul.f32 %v278, %v1071
        %v1108 = vmul.f32 %v279, %v1071
        %v1109 = vmul.f32 %v280, %v1071
        %v1110 = vmul.f32 %v281, %v1071
        %v1111 = vmul.f32 %v282, %v1071
        %v1112 = vmul.f32 %v283, %v1071
        %v1113 = vmul.f32 %v284, %v1071
        %v1114 = vmul.f32 %v285, %v1071
        %v1115 = vmul.f32 %v286, %v1071
        %v1116 = vmul.f32 %v287, %v1071
        %v1117 = vmul.f32 %v288, %v1071
        %v1118 = vmul.f32 %v289, %v1071
        %v1119 = vmul.f32 %v290, %v1071
        %v1120 = vmul.f32 %v291, %v1075
        %v1121 = vmul.f32 %v292, %v1075
        %v1122 = vmul.f32 %v293, %v1075
        %v1123 = vmul.f32 %v294, %v1075
        %v1124 = vmul.f32 %v295, %v1075
        %v1125 = vmul.f32 %v296, %v1075
        %v1126 = vmul.f32 %v297, %v1075
        %v1127 = vmul.f32 %v298, %v1075
        %v1128 = vmul.f32 %v299, %v1075
        %v1129 = vmul.f32 %v300, %v1075
        %v1130 = vmul.f32 %v301, %v1075
        %v1131 = vmul.f32 %v302, %v1075
        %v1132 = vmul.f32 %v303, %v1075
        %v1133 = vmul.f32 %v304, %v1075
        %v1134 = vmul.f32 %v305, %v1075
        %v1135 = vmul.f32 %v306, %v1075
        %v1136 = vmul.f32 %v307, %v1075
        %v1137 = vmul.f32 %v308, %v1075
        %v1138 = vmul.f32 %v309, %v1075
        %v1139 = vmul.f32 %v310, %v1075
        %v1140 = vmul.f32 %v311, %v1075
        %v1141 = vmul.f32 %v312, %v1075
        %v1142 = vmul.f32 %v313, %v1075
        %v1143 = vmul.f32 %v314, %v1075
        %v1144 = vmul.f32 %v315, %v1075
        %v1145 = vmul.f32 %v316, %v1075
        %v1146 = vmul.f32 %v317, %v1075
        %v1147 = vmul.f32 %v318, %v1075
        %v1148 = vmul.f32 %v319, %v1075
        %v1149 = vmul.f32 %v320, %v1075
        %v1150 = vmul.f32 %v321, %v1075
        %v1151 = vmul.f32 %v322, %v1075
        %v1152 = vmul.f32 %v323, %v1079
        %v1153 = vmul.f32 %v324, %v1079
        %v1154 = vmul.f32 %v325, %v1079
        %v1155 = vmul.f32 %v326, %v1079
        %v1156 = vmul.f32 %v327, %v1079
        %v1157 = vmul.f32 %v328, %v1079
        %v1158 = vmul.f32 %v329, %v1079
        %v1159 = vmul.f32 %v330, %v1079
        %v1160 = vmul.f32 %v331, %v1079
        %v1161 = vmul.f32 %v332, %v1079
        %v1162 = vmul.f32 %v333, %v1079
        %v1163 = vmul.f32 %v334, %v1079
        %v1164 = vmul.f32 %v335, %v1079
        %v1165 = vmul.f32 %v336, %v1079
        %v1166 = vmul.f32 %v337, %v1079
        %v1167 = vmul.f32 %v338, %v1079
        %v1168 = vmul.f32 %v339, %v1079
        %v1169 = vmul.f32 %v340, %v1079
        %v1170 = vmul.f32 %v341, %v1079
        %v1171 = vmul.f32 %v342, %v1079
        %v1172 = vmul.f32 %v343, %v1079
        %v1173 = vmul.f32 %v344, %v1079
        %v1174 = vmul.f32 %v345, %v1079
        %v1175 = vmul.f32 %v346, %v1079
        %v1176 = vmul.f32 %v347, %v1079
        %v1177 = vmul.f32 %v348, %v1079
        %v1178 = vmul.f32 %v349, %v1079
        %v1179 = vmul.f32 %v350, %v1079
        %v1180 = vmul.f32 %v351, %v1079
        %v1181 = vmul.f32 %v352, %v1079
        %v1182 = vmul.f32 %v353, %v1079
        %v1183 = vmul.f32 %v354, %v1079
        %v1184 = vmul.f32 %v355, %v1083
        %v1185 = vmul.f32 %v356, %v1083
        %v1186 = vmul.f32 %v357, %v1083
        %v1187 = vmul.f32 %v358, %v1083
        %v1188 = vmul.f32 %v359, %v1083
        %v1189 = vmul.f32 %v360, %v1083
        %v1190 = vmul.f32 %v361, %v1083
        %v1191 = vmul.f32 %v362, %v1083
        %v1192 = vmul.f32 %v363, %v1083
        %v1193 = vmul.f32 %v364, %v1083
        %v1194 = vmul.f32 %v365, %v1083
        %v1195 = vmul.f32 %v366, %v1083
        %v1196 = vmul.f32 %v367, %v1083
        %v1197 = vmul.f32 %v368, %v1083
        %v1198 = vmul.f32 %v369, %v1083
        %v1199 = vmul.f32 %v370, %v1083
        %v1200 = vmul.f32 %v371, %v1083
        %v1201 = vmul.f32 %v372, %v1083
        %v1202 = vmul.f32 %v373, %v1083
        %v1203 = vmul.f32 %v374, %v1083
        %v1204 = vmul.f32 %v375, %v1083
        %v1205 = vmul.f32 %v376, %v1083
        %v1206 = vmul.f32 %v377, %v1083
        %v1207 = vmul.f32 %v378, %v1083
        %v1208 = vmul.f32 %v379, %v1083
        %v1209 = vmul.f32 %v380, %v1083
        %v1210 = vmul.f32 %v381, %v1083
        %v1211 = vmul.f32 %v382, %v1083
        %v1212 = vmul.f32 %v383, %v1083
        %v1213 = vmul.f32 %v384, %v1083
        %v1214 = vmul.f32 %v385, %v1083
        %v1215 = vmul.f32 %v386, %v1083
        %1216 = vst [vmem:[%s256] sm:$0xff] %v1088
        %1217 = vst [vmem:[%s256 + $0x8] sm:$0xff] %v1089
        %1218 = vst [vmem:[%s256 + $0x10] sm:$0xff] %v1090
        %1219 = vst [vmem:[%s256 + $0x18] sm:$0xff] %v1091
        %1220 = vst [vmem:[%s256 + $0x20] sm:$0xff] %v1092
        %1221 = vst [vmem:[%s256 + $0x28] sm:$0xff] %v1093
        %1222 = vst [vmem:[%s256 + $0x30] sm:$0xff] %v1094
        %1223 = vst [vmem:[%s256 + $0x38] sm:$0xff] %v1095
        %1224 = vst [vmem:[%s256 + $0x40] sm:$0xff] %v1096
        %1225 = vst [vmem:[%s256 + $0x48] sm:$0xff] %v1097
        %1226 = vst [vmem:[%s256 + $0x50] sm:$0xff] %v1098
        %1227 = vst [vmem:[%s256 + $0x58] sm:$0xff] %v1099
        %1228 = vst [vmem:[%s256 + $0x60] sm:$0xff] %v1100
        %1229 = vst [vmem:[%s256 + $0x68] sm:$0xff] %v1101
        %1230 = vst [vmem:[%s256 + $0x70] sm:$0xff] %v1102
        %1231 = vst [vmem:[%s256 + $0x78] sm:$0xff] %v1103
        %1232 = vst [vmem:[%s256 + $0x80] sm:$0xff] %v1104
        %1233 = vst [vmem:[%s256 + $0x88] sm:$0xff] %v1105
        %1234 = vst [vmem:[%s256 + $0x90] sm:$0xff] %v1106
        %1235 = vst [vmem:[%s256 + $0x98] sm:$0xff] %v1107
        %1236 = vst [vmem:[%s256 + $0xa0] sm:$0xff] %v1108
        %1237 = vst [vmem:[%s256 + $0xa8] sm:$0xff] %v1109
        %1238 = vst [vmem:[%s256 + $0xb0] sm:$0xff] %v1110
        %1239 = vst [vmem:[%s256 + $0xb8] sm:$0xff] %v1111
        %1240 = vst [vmem:[%s256 + $0xc0] sm:$0xff] %v1112
        %1241 = vst [vmem:[%s256 + $0xc8] sm:$0xff] %v1113
        %1242 = vst [vmem:[%s256 + $0xd0] sm:$0xff] %v1114
        %1243 = vst [vmem:[%s256 + $0xd8] sm:$0xff] %v1115
        %1244 = vst [vmem:[%s256 + $0xe0] sm:$0xff] %v1116
        %1245 = vst [vmem:[%s256 + $0xe8] sm:$0xff] %v1117
        %1246 = vst [vmem:[%s256 + $0xf0] sm:$0xff] %v1118
        %1247 = vst [vmem:[%s256 + $0xf8] sm:$0xff] %v1119
        %1248 = vst [vmem:[%s256 + $0x100] sm:$0xff] %v1120
        %1249 = vst [vmem:[%s256 + $0x108] sm:$0xff] %v1121
        %1250 = vst [vmem:[%s256 + $0x110] sm:$0xff] %v1122
        %1251 = vst [vmem:[%s256 + $0x118] sm:$0xff] %v1123
        %1252 = vst [vmem:[%s256 + $0x120] sm:$0xff] %v1124
        %1253 = vst [vmem:[%s256 + $0x128] sm:$0xff] %v1125
        %1254 = vst [vmem:[%s256 + $0x130] sm:$0xff] %v1126
        %1255 = vst [vmem:[%s256 + $0x138] sm:$0xff] %v1127
        %1256 = vst [vmem:[%s256 + $0x140] sm:$0xff] %v1128
        %1257 = vst [vmem:[%s256 + $0x148] sm:$0xff] %v1129
        %1258 = vst [vmem:[%s256 + $0x150] sm:$0xff] %v1130
        %1259 = vst [vmem:[%s256 + $0x158] sm:$0xff] %v1131
        %1260 = vst [vmem:[%s256 + $0x160] sm:$0xff] %v1132
        %1261 = vst [vmem:[%s256 + $0x168] sm:$0xff] %v1133
        %1262 = vst [vmem:[%s256 + $0x170] sm:$0xff] %v1134
        %1263 = vst [vmem:[%s256 + $0x178] sm:$0xff] %v1135
        %1264 = vst [vmem:[%s256 + $0x180] sm:$0xff] %v1136
        %1265 = vst [vmem:[%s256 + $0x188] sm:$0xff] %v1137
        %1266 = vst [vmem:[%s256 + $0x190] sm:$0xff] %v1138
        %1267 = vst [vmem:[%s256 + $0x198] sm:$0xff] %v1139
        %1268 = vst [vmem:[%s256 + $0x1a0] sm:$0xff] %v1140
        %1269 = vst [vmem:[%s256 + $0x1a8] sm:$0xff] %v1141
        %1270 = vst [vmem:[%s256 + $0x1b0] sm:$0xff] %v1142
        %1271 = vst [vmem:[%s256 + $0x1b8] sm:$0xff] %v1143
        %1272 = vst [vmem:[%s256 + $0x1c0] sm:$0xff] %v1144
        %1273 = vst [vmem:[%s256 + $0x1c8] sm:$0xff] %v1145
        %1274 = vst [vmem:[%s256 + $0x1d0] sm:$0xff] %v1146
        %1275 = vst [vmem:[%s256 + $0x1d8] sm:$0xff] %v1147
        %1276 = vst [vmem:[%s256 + $0x1e0] sm:$0xff] %v1148
        %1277 = vst [vmem:[%s256 + $0x1e8] sm:$0xff] %v1149
        %1278 = vst [vmem:[%s256 + $0x1f0] sm:$0xff] %v1150
        %1279 = vst [vmem:[%s256 + $0x1f8] sm:$0xff] %v1151
        %1280 = vst [vmem:[%s256 + $0x200] sm:$0xff] %v1152
        %1281 = vst [vmem:[%s256 + $0x208] sm:$0xff] %v1153
        %1282 = vst [vmem:[%s256 + $0x210] sm:$0xff] %v1154
        %1283 = vst [vmem:[%s256 + $0x218] sm:$0xff] %v1155
        %1284 = vst [vmem:[%s256 + $0x220] sm:$0xff] %v1156
        %1285 = vst [vmem:[%s256 + $0x228] sm:$0xff] %v1157
        %1286 = vst [vmem:[%s256 + $0x230] sm:$0xff] %v1158
        %1287 = vst [vmem:[%s256 + $0x238] sm:$0xff] %v1159
        %1288 = vst [vmem:[%s256 + $0x240] sm:$0xff] %v1160
        %1289 = vst [vmem:[%s256 + $0x248] sm:$0xff] %v1161
        %1290 = vst [vmem:[%s256 + $0x250] sm:$0xff] %v1162
        %1291 = vst [vmem:[%s256 + $0x258] sm:$0xff] %v1163
        %1292 = vst [vmem:[%s256 + $0x260] sm:$0xff] %v1164
        %1293 = vst [vmem:[%s256 + $0x268] sm:$0xff] %v1165
        %1294 = vst [vmem:[%s256 + $0x270] sm:$0xff] %v1166
        %1295 = vst [vmem:[%s256 + $0x278] sm:$0xff] %v1167
        %1296 = vst [vmem:[%s256 + $0x280] sm:$0xff] %v1168
        %1297 = vst [vmem:[%s256 + $0x288] sm:$0xff] %v1169
        %1298 = vst [vmem:[%s256 + $0x290] sm:$0xff] %v1170
        %1299 = vst [vmem:[%s256 + $0x298] sm:$0xff] %v1171
        %1300 = vst [vmem:[%s256 + $0x2a0] sm:$0xff] %v1172
        %1301 = vst [vmem:[%s256 + $0x2a8] sm:$0xff] %v1173
        %1302 = vst [vmem:[%s256 + $0x2b0] sm:$0xff] %v1174
        %1303 = vst [vmem:[%s256 + $0x2b8] sm:$0xff] %v1175
        %1304 = vst [vmem:[%s256 + $0x2c0] sm:$0xff] %v1176
        %1305 = vst [vmem:[%s256 + $0x2c8] sm:$0xff] %v1177
        %1306 = vst [vmem:[%s256 + $0x2d0] sm:$0xff] %v1178
        %1307 = vst [vmem:[%s256 + $0x2d8] sm:$0xff] %v1179
        %1308 = vst [vmem:[%s256 + $0x2e0] sm:$0xff] %v1180
        %1309 = vst [vmem:[%s256 + $0x2e8] sm:$0xff] %v1181
        %1310 = vst [vmem:[%s256 + $0x2f0] sm:$0xff] %v1182
        %1311 = vst [vmem:[%s256 + $0x2f8] sm:$0xff] %v1183
        %1312 = vst [vmem:[%s256 + $0x300] sm:$0xff] %v1184
        %1313 = vst [vmem:[%s256 + $0x308] sm:$0xff] %v1185
        %1314 = vst [vmem:[%s256 + $0x310] sm:$0xff] %v1186
        %1315 = vst [vmem:[%s256 + $0x318] sm:$0xff] %v1187
        %1316 = vst [vmem:[%s256 + $0x320] sm:$0xff] %v1188
        %1317 = vst [vmem:[%s256 + $0x328] sm:$0xff] %v1189
        %1318 = vst [vmem:[%s256 + $0x330] sm:$0xff] %v1190
        %1319 = vst [vmem:[%s256 + $0x338] sm:$0xff] %v1191
        %1320 = vst [vmem:[%s256 + $0x340] sm:$0xff] %v1192
        %1321 = vst [vmem:[%s256 + $0x348] sm:$0xff] %v1193
        %1322 = vst [vmem:[%s256 + $0x350] sm:$0xff] %v1194
        %1323 = vst [vmem:[%s256 + $0x358] sm:$0xff] %v1195
        %1324 = vst [vmem:[%s256 + $0x360] sm:$0xff] %v1196
        %1325 = vst [vmem:[%s256 + $0x368] sm:$0xff] %v1197
        %1326 = vst [vmem:[%s256 + $0x370] sm:$0xff] %v1198
        %1327 = vst [vmem:[%s256 + $0x378] sm:$0xff] %v1199
        %1328 = vst [vmem:[%s256 + $0x380] sm:$0xff] %v1200
        %1329 = vst [vmem:[%s256 + $0x388] sm:$0xff] %v1201
        %1330 = vst [vmem:[%s256 + $0x390] sm:$0xff] %v1202
        %1331 = vst [vmem:[%s256 + $0x398] sm:$0xff] %v1203
        %1332 = vst [vmem:[%s256 + $0x3a0] sm:$0xff] %v1204
        %1333 = vst [vmem:[%s256 + $0x3a8] sm:$0xff] %v1205
        %1334 = vst [vmem:[%s256 + $0x3b0] sm:$0xff] %v1206
        %1335 = vst [vmem:[%s256 + $0x3b8] sm:$0xff] %v1207
        %1336 = vst [vmem:[%s256 + $0x3c0] sm:$0xff] %v1208
        %1337 = vst [vmem:[%s256 + $0x3c8] sm:$0xff] %v1209
        %1338 = vst [vmem:[%s256 + $0x3d0] sm:$0xff] %v1210
        %1339 = vst [vmem:[%s256 + $0x3d8] sm:$0xff] %v1211
        %1340 = vst [vmem:[%s256 + $0x3e0] sm:$0xff] %v1212
        %1341 = vst [vmem:[%s256 + $0x3e8] sm:$0xff] %v1213
        %1342 = vst [vmem:[%s256 + $0x3f0] sm:$0xff] %v1214
        %1343 = vst [vmem:[%s256 + $0x3f8] sm:$0xff] %v1215
        %s1344 = sand.u32 %s141, 1
        %s1345 = scalar_lea.sflag [#allocation4], %s1344
        %s1346 = sand.u32 %s141, 1
        %s1347 = smul.addr %s1346, 1024
        %s1348 = scalar_lea.vmem [#allocation7], %s1347
        // Predicated region
        $region49: #{_lambda_.1} parent=39 // pred_check
          %p1349 = pneg %p151
        $region50: #{_lambda_.1} parent=39 // pred_check_branch
          %1351 = sbr.rel (%p1349) target = $region52
        $region51: #{_lambda_.1} parent=39 // pred_region
          %s1352 = smul.u32 4, %s23
          %s1354 = ssub.s32 16384, 16384
          %1355 = vsyncadd %s1345, %s1354
          %s1356 = smul.addr %s1352, 32
          %s1357 = smul.addr %s1356, 128
          %s1358 = scalar_lea.hbm %s5, %s1357
          %s1359 = sshll.u32 %s1348, 4
          %s1360 = int_to_ptr.vmem [resolvable:$true] %s1359
          %1365 = dma.vmem_to_hbm [thread:$0]  %s1360, 16384, %s1358, %s1345, 128, 128, 8
        $region52: #{_lambda_.1} parent=39 // pred_fallthru
          _
      $region40: #{_lambda_.1} parent=5 // pred_fallthru
        _
      %p1366 = scmp.le.s32.totalorder 2, %s18
      // Predicated region
      $region53: #{_lambda_.1} parent=5 // pred_check
        %p1367 = pneg %p1366
      $region54: #{_lambda_.1} parent=5 // pred_check_branch
        %1369 = sbr.rel (%p1367) target = $region56
      $region55: #{_lambda_.1} parent=5 // pred_region
        %s1370 = ssub.s32 %s18, 2
        // Predicated region
        $region57: #{_lambda_.1} parent=55 // pred_check
          %p1371 = pneg %p157
        $region58: #{_lambda_.1} parent=55 // pred_check_branch
          %1373 = sbr.rel (%p1371) target = $region60
        $region59: #{_lambda_.1} parent=55 // pred_region
          %s1374 = sand.u32 %s142, 1
          %s1375 = scalar_lea.sflag [#allocation4], %s1374
          %s1376 = sand.u32 %s142, 1
          %s1377 = smul.addr %s1376, 1024
          %s1378 = scalar_lea.vmem [#allocation7], %s1377
          %1379 = dma.done %s1375, 16384
        $region60: #{_lambda_.1} parent=55 // pred_fallthru
          _
      $region56: #{_lambda_.1} parent=5 // pred_fallthru
        _
    $region6: #{_lambda_.1} parent=1 // loop_footer
      %s22 = sadd.s32 1, %s18
    $region7: #{_lambda_.1} parent=1 // loop_footer_branch
      %17 = sbr.rel target = $region3
    $region8: #{_lambda_.1} parent=1 // loop_exit
      _
    %1380 = vsyncpa [#allocation3], 1
    %s1381 = scalar_lea.sflag [#allocation3], 1
    %1382 = vsyncpa %s1381, 1
    %1383 = vsyncpa [#allocation6], 1
    %1384 = vsyncpa [#allocation4], 1
    %s1385 = scalar_lea.sflag [#allocation4], 1
    %1386 = vsyncpa %s1385, 1

</llo_original>
